<compile_context>
chip_gen: v7x
topology: tpu7x:2x2x1
jax: 0.10.0
libtpu: 0.0.40
codegen_flags: <defaults>
</compile_context>

<pallas_src>
import math
import functools

import jax
import jax.numpy as jnp
import numpy as np
from jax.experimental import pallas as pl
from jax.experimental.pallas import tpu as pltpu


# ----------------------------- Pallas kernel -----------------------------

def _encoder_stack_kernel(x_ref,
                          wq_ref, bq_ref, wk_ref, bk_ref, wv_ref, bv_ref,
                          wo_ref, bo_ref,
                          ln1_g_ref, ln1_b_ref,
                          w1_ref, b1_ref, w2_ref, b2_ref,
                          ln2_g_ref, ln2_b_ref,
                          out_ref, *, nhead, batch, seq):
    """All encoder layers fused; grid axis 0 = layer index (sequential).

    The (B*S, D) activation lives in the resident output block across grid steps;
    layer l's weights are DMA'd per step (pipelined against layer l-1 compute).
    """
    eps = 1e-5
    bf16 = jnp.bfloat16

    @pl.when(pl.program_id(0) == 0)
    def _():
        out_ref[...] = x_ref[...]

    x = out_ref[...]                         # (B*S, D) f32 resident activation
    BS, D = x.shape
    hd = D // nhead
    scale = 1.0 / math.sqrt(hd)

    def mm(a, b):                            # bf16 MXU operands, f32 accumulation
        return jnp.dot(a.astype(bf16), b.astype(bf16),
                       preferred_element_type=jnp.float32)

    # ---- QKV projections over all B*S rows at once ----
    x_b = x.astype(bf16)
    q = jnp.dot(x_b, wq_ref[...].astype(bf16), preferred_element_type=jnp.float32) + bq_ref[...]
    k = jnp.dot(x_b, wk_ref[...].astype(bf16), preferred_element_type=jnp.float32) + bk_ref[...]
    v = jnp.dot(x_b, wv_ref[...].astype(bf16), preferred_element_type=jnp.float32) + bv_ref[...]

    q3 = q.reshape(batch, seq, D).astype(bf16)
    k3 = k.reshape(batch, seq, D).astype(bf16)
    v3 = v.reshape(batch, seq, D).astype(bf16)
    wo = wo_ref[...].astype(bf16)

    # ---- self-attention: heads statically unrolled, each batched over B via 3-D
    #      dot_general (no explicit transpose, no concat); W_o folded in per head. ----
    ctx_proj = jnp.zeros((BS, D), jnp.float32)
    for h in range(nhead):
        sl = slice(h * hd, (h + 1) * hd)
        qh, kh, vh = q3[:, :, sl], k3[:, :, sl], v3[:, :, sl]          # (B, S, hd) bf16
        s = jnp.einsum('bqd,bkd->bqk', qh, kh,
                       preferred_element_type=jnp.float32) * scale     # (B, S, S) f32
        # TODO(synk): additive src_mask would be applied to `s` here (None in this test path).
        s = s - jnp.max(s, axis=-1, keepdims=True)
        p = jnp.exp(s)
        denom = jnp.sum(p, axis=-1, keepdims=True)                     # (B, S, 1)
        ctx_h = jnp.einsum('bqk,bkd->bqd', p.astype(bf16), vh,
                           preferred_element_type=jnp.float32)          # (B, S, hd)
        ctx_h = ctx_h * pl.reciprocal(denom, approx=True)               # EUP reciprocal
        ctx_proj = ctx_proj + mm(ctx_h.reshape(BS, hd), wo[sl, :])      # per-head W_o slice
    attn = ctx_proj + bo_ref[...]

    # ---- residual + LayerNorm 1 (f32) ----
    h1 = x + attn
    mu1 = jnp.mean(h1, axis=-1, keepdims=True)
    var1 = jnp.mean(jnp.square(h1 - mu1), axis=-1, keepdims=True)
    h1n = (h1 - mu1) * jax.lax.rsqrt(var1 + eps) * ln1_g_ref[...] + ln1_b_ref[...]

    # ---- feed-forward: Linear -> ReLU -> Linear ----
    f = mm(h1n, w1_ref[...]) + b1_ref[...]
    f = jnp.maximum(f, 0.0)
    f = mm(f, w2_ref[...]) + b2_ref[...]

    # ---- residual + LayerNorm 2 (f32) ----
    h2 = h1n + f
    mu2 = jnp.mean(h2, axis=-1, keepdims=True)
    var2 = jnp.mean(jnp.square(h2 - mu2), axis=-1, keepdims=True)
    out_ref[...] = (h2 - mu2) * jax.lax.rsqrt(var2 + eps) * ln2_g_ref[...] + ln2_b_ref[...]


def transformer_encoder_pallas(x, layers_params, nhead):
    """TransformerEncoder.forward: all layers fused into a single pallas_call."""
    B, S, D = x.shape
    num_layers = len(layers_params)
    n_params = len(layers_params[0])
    # Stack per-layer params along a leading layer axis: (L, ...).
    stacked = [jnp.stack([layer[i] for layer in layers_params]) for i in range(n_params)]

    def layer_spec(arr):
        nd = arr.ndim
        # Squeeze the layer dim; kernel sees the per-layer (r, c) tile of layer `l`.
        return pl.BlockSpec((None,) + tuple(arr.shape[1:]),
                            lambda l, _nd=nd: (l,) + (0,) * (_nd - 1))

    x_flat = x.reshape(B * S, D)
    in_specs = [pl.BlockSpec((B * S, D), lambda l: (0, 0))]
    in_specs += [layer_spec(a) for a in stacked]

    kernel = functools.partial(_encoder_stack_kernel, nhead=nhead, batch=B, seq=S)
    out_flat = pl.pallas_call(
        kernel,
        out_shape=jax.ShapeDtypeStruct((B * S, D), jnp.float32),
        grid=(num_layers,),
        in_specs=in_specs,
        out_specs=pl.BlockSpec((B * S, D), lambda l: (0, 0)),
        compiler_params=pltpu.CompilerParams(
            dimension_semantics=("arbitrary",),        # layers are sequential
            vmem_limit_bytes=32 * 1024 * 1024),
    )(x_flat, *stacked)
    return out_flat.reshape(B, S, D)


# ----------------------------- pure-JAX reference (same mixed precision) -----------------------------

def _encoder_layer_ref(x, params, nhead):
    (wq, bq, wk, bk, wv, bv, wo, bo,
     ln1_g, ln1_b, w1, b1, w2, b2, ln2_g, ln2_b) = params
    B, S, D = x.shape
    hd = D // nhead
    scale = 1.0 / math.sqrt(hd)
    eps = 1e-5
    bf16 = jnp.bfloat16

    def mm(a, b):
        return jnp.dot(a.astype(bf16), b.astype(bf16), preferred_element_type=jnp.float32)

    q = mm(x, wq) + bq
    k = mm(x, wk) + bk
    v = mm(x, wv) + bv
    qh = q.reshape(B, S, nhead, hd).transpose(0, 2, 1, 3)
    kh = k.reshape(B, S, nhead, hd).transpose(0, 2, 1, 3)
    vh = v.reshape(B, S, nhead, hd).transpose(0, 2, 1, 3)
    s = jnp.einsum('bhqd,bhkd->bhqk', qh.astype(bf16), kh.astype(bf16),
                   preferred_element_type=jnp.float32) * scale
    s = s - jnp.max(s, axis=-1, keepdims=True)
    p = jnp.exp(s)
    denom = jnp.sum(p, axis=-1, keepdims=True)
    ctx = jnp.einsum('bhqk,bhkd->bhqd', p.astype(bf16), vh.astype(bf16),
                     preferred_element_type=jnp.float32) / denom
    ctx = ctx.transpose(0, 2, 1, 3).reshape(B, S, D)
    attn = mm(ctx, wo) + bo

    h1 = x + attn
    mu1 = jnp.mean(h1, axis=-1, keepdims=True)
    var1 = jnp.mean(jnp.square(h1 - mu1), axis=-1, keepdims=True)
    h1n = (h1 - mu1) * jax.lax.rsqrt(var1 + eps) * ln1_g + ln1_b

    f = jnp.maximum(mm(h1n, w1) + b1, 0.0)
    f = mm(f, w2) + b2
    h2 = h1n + f
    mu2 = jnp.mean(h2, axis=-1, keepdims=True)
    var2 = jnp.mean(jnp.square(h2 - mu2), axis=-1, keepdims=True)
    return (h2 - mu2) * jax.lax.rsqrt(var2 + eps) * ln2_g + ln2_b


def transformer_encoder_ref(x, layers_params, nhead):
    for params in layers_params:
        x = _encoder_layer_ref(x, params, nhead)
    return x


# ----------------------------- param init -----------------------------

def init_layer_params(key, d_model, dim_ff):
    ks = jax.random.split(key, 6)
    lim_d = 1.0 / math.sqrt(d_model)
    lim_f = 1.0 / math.sqrt(dim_ff)
    u = lambda k, shape, lim: jax.random.uniform(k, shape, jnp.float32, -lim, lim)
    wq = u(ks[0], (d_model, d_model), lim_d)
    wk = u(ks[1], (d_model, d_model), lim_d)
    wv = u(ks[2], (d_model, d_model), lim_d)
    wo = u(ks[3], (d_model, d_model), lim_d)
    w1 = u(ks[4], (d_model, dim_ff), lim_d)
    w2 = u(ks[5], (dim_ff, d_model), lim_f)
    z_d = jnp.zeros((1, d_model), jnp.float32)
    z_f = jnp.zeros((1, dim_ff), jnp.float32)
    one_d = jnp.ones((1, d_model), jnp.float32)
    return (wq, z_d, wk, z_d, wv, z_d, wo, z_d,
            one_d, z_d, w1, z_f, w2, z_d, one_d, z_d)


# ----------------------------- main -----------------------------

if __name__ == "__main__":
    B, S, D = 2, 8, 32
    NHEAD = 4
    DIM_FF = 64
    NUM_LAYERS = 2

    root = jax.random.PRNGKey(0)
    kx, kp = jax.random.split(root)
    x = jax.random.normal(kx, (B, S, D), jnp.float32)

    layer_keys = jax.random.split(kp, NUM_LAYERS)
    layers_params = [init_layer_params(k, D, DIM_FF) for k in layer_keys]

    out = transformer_encoder_pallas(x, layers_params, NHEAD)
    out = jax.block_until_ready(out)

    ref = transformer_encoder_ref(x, layers_params, NHEAD)
    # bf16 MXU operands + approx EUP reciprocal in the kernel -> compare at mixed-precision tolerance.
    np.testing.assert_allclose(np.asarray(out), np.asarray(ref), rtol=3e-3, atol=3e-3)

    print("KERNEL_OK")
</pallas_src>

<mosaic_0001>
module attributes {stable_mosaic.version = 11 : i64} {
  func.func @_encoder_stack_kernel(%arg0: i32, %arg1: memref<16x32xf32, #tpu.memory_space<vmem>>, %arg2: memref<1x32x32xf32, #tpu.memory_space<vmem>>, %arg3: memref<1x1x32xf32, #tpu.memory_space<vmem>>, %arg4: memref<1x32x32xf32, #tpu.memory_space<vmem>>, %arg5: memref<1x1x32xf32, #tpu.memory_space<vmem>>, %arg6: memref<1x32x32xf32, #tpu.memory_space<vmem>>, %arg7: memref<1x1x32xf32, #tpu.memory_space<vmem>>, %arg8: memref<1x32x32xf32, #tpu.memory_space<vmem>>, %arg9: memref<1x1x32xf32, #tpu.memory_space<vmem>>, %arg10: memref<1x1x32xf32, #tpu.memory_space<vmem>>, %arg11: memref<1x1x32xf32, #tpu.memory_space<vmem>>, %arg12: memref<1x32x64xf32, #tpu.memory_space<vmem>>, %arg13: memref<1x1x64xf32, #tpu.memory_space<vmem>>, %arg14: memref<1x64x32xf32, #tpu.memory_space<vmem>>, %arg15: memref<1x1x32xf32, #tpu.memory_space<vmem>>, %arg16: memref<1x1x32xf32, #tpu.memory_space<vmem>>, %arg17: memref<1x1x32xf32, #tpu.memory_space<vmem>>, %arg18: memref<16x32xf32, #tpu.memory_space<vmem>>) attributes {dimension_semantics = [#tpu.dimension_semantics<arbitrary>], iteration_bounds = array<i64: 2>, scalar_prefetch = 0 : i64, scratch_operands = 0 : i64, tpu.core_type = #tpu.core_type<tc>, window_params = [{pipeline_mode = #tpu.pipeline_mode<synchronous>, transform_indices = @transform_0, window_bounds = array<i64: 16, 32>}, {transform_indices = @transform_1, window_bounds = array<i64: 1, 32, 32>}, {transform_indices = @transform_2, window_bounds = array<i64: 1, 1, 32>}, {transform_indices = @transform_3, window_bounds = array<i64: 1, 32, 32>}, {transform_indices = @transform_4, window_bounds = array<i64: 1, 1, 32>}, {transform_indices = @transform_5, window_bounds = array<i64: 1, 32, 32>}, {transform_indices = @transform_6, window_bounds = array<i64: 1, 1, 32>}, {transform_indices = @transform_7, window_bounds = array<i64: 1, 32, 32>}, {transform_indices = @transform_8, window_bounds = array<i64: 1, 1, 32>}, {transform_indices = @transform_9, window_bounds = array<i64: 1, 1, 32>}, {transform_indices = @transform_10, window_bounds = array<i64: 1, 1, 32>}, {transform_indices = @transform_11, window_bounds = array<i64: 1, 32, 64>}, {transform_indices = @transform_12, window_bounds = array<i64: 1, 1, 64>}, {transform_indices = @transform_13, window_bounds = array<i64: 1, 64, 32>}, {transform_indices = @transform_14, window_bounds = array<i64: 1, 1, 32>}, {transform_indices = @transform_15, window_bounds = array<i64: 1, 1, 32>}, {transform_indices = @transform_16, window_bounds = array<i64: 1, 1, 32>}, {pipeline_mode = #tpu.pipeline_mode<synchronous>, transform_indices = @transform_17, window_bounds = array<i64: 16, 32>}]} {
    %c0_i32 = arith.constant 0 : i32
    %0 = arith.cmpi eq, %arg0, %c0_i32 : i32
    %1 = arith.extui %0 : i1 to i32
    %c0_i32_0 = arith.constant 0 : i32
    %2 = arith.cmpi ne, %1, %c0_i32_0 : i32
    scf.if %2 {
      %c0_92 = arith.constant 0 : index
      %c0_93 = arith.constant 0 : index
      %210 = vector.load %arg1[%c0_92, %c0_93] : memref<16x32xf32, #tpu.memory_space<vmem>>, vector<16x32xf32>
      %c0_94 = arith.constant 0 : index
      %c0_95 = arith.constant 0 : index
      %211 = vector.load %arg18[%c0_94, %c0_95] : memref<16x32xf32, #tpu.memory_space<vmem>>, vector<16x32xf32>
      tpu.vector_store %arg18[%c0_94, %c0_95], %210 {strides = array<i32>} : memref<16x32xf32, #tpu.memory_space<vmem>>, vector<16x32xf32>,
    } else {
    }
    %c0 = arith.constant 0 : index
    %c0_1 = arith.constant 0 : index
    %3 = vector.load %arg18[%c0, %c0_1] : memref<16x32xf32, #tpu.memory_space<vmem>>, vector<16x32xf32>
    %4 = arith.truncf %3 : vector<16x32xf32> to vector<16x32xbf16>
    %c0_2 = arith.constant 0 : index
    %c0_3 = arith.constant 0 : index
    %c0_4 = arith.constant 0 : index
    %5 = vector.load %arg2[%c0_2, %c0_3, %c0_4] : memref<1x32x32xf32, #tpu.memory_space<vmem>>, vector<1x32x32xf32>
    %6 = vector.shape_cast %5 : vector<1x32x32xf32> to vector<32x32xf32>
    %7 = arith.truncf %6 : vector<32x32xf32> to vector<32x32xbf16>
    %cst = arith.constant dense<0.000000e+00> : vector<16x32xf32>
    %8 = tpu.matmul %4, %7, %cst {dimension_numbers = #tpu.dot_dimension_numbers<[1], [0], [0], [1], [0, 0, 1, 1], [], []>} : vector<16x32xbf16>, vector<32x32xbf16>, vector<16x32xf32> -> vector<16x32xf32>
    %c0_5 = arith.constant 0 : index
    %c0_6 = arith.constant 0 : index
    %c0_7 = arith.constant 0 : index
    %9 = vector.load %arg3[%c0_5, %c0_6, %c0_7] : memref<1x1x32xf32, #tpu.memory_space<vmem>>, vector<1x1x32xf32>
    %10 = vector.shape_cast %9 : vector<1x1x32xf32> to vector<1x32xf32>
    %11 = vector.broadcast %10 : vector<1x32xf32> to vector<16x32xf32>
    %12 = arith.addf %8, %11 : vector<16x32xf32>
    %c0_8 = arith.constant 0 : index
    %c0_9 = arith.constant 0 : index
    %c0_10 = arith.constant 0 : index
    %13 = vector.load %arg4[%c0_8, %c0_9, %c0_10] : memref<1x32x32xf32, #tpu.memory_space<vmem>>, vector<1x32x32xf32>
    %14 = vector.shape_cast %13 : vector<1x32x32xf32> to vector<32x32xf32>
    %15 = arith.truncf %14 : vector<32x32xf32> to vector<32x32xbf16>
    %cst_11 = arith.constant dense<0.000000e+00> : vector<16x32xf32>
    %16 = tpu.matmul %4, %15, %cst_11 {dimension_numbers = #tpu.dot_dimension_numbers<[1], [0], [0], [1], [0, 0, 1, 1], [], []>} : vector<16x32xbf16>, vector<32x32xbf16>, vector<16x32xf32> -> vector<16x32xf32>
    %c0_12 = arith.constant 0 : index
    %c0_13 = arith.constant 0 : index
    %c0_14 = arith.constant 0 : index
    %17 = vector.load %arg5[%c0_12, %c0_13, %c0_14] : memref<1x1x32xf32, #tpu.memory_space<vmem>>, vector<1x1x32xf32>
    %18 = vector.shape_cast %17 : vector<1x1x32xf32> to vector<1x32xf32>
    %19 = vector.broadcast %18 : vector<1x32xf32> to vector<16x32xf32>
    %20 = arith.addf %16, %19 : vector<16x32xf32>
    %c0_15 = arith.constant 0 : index
    %c0_16 = arith.constant 0 : index
    %c0_17 = arith.constant 0 : index
    %21 = vector.load %arg6[%c0_15, %c0_16, %c0_17] : memref<1x32x32xf32, #tpu.memory_space<vmem>>, vector<1x32x32xf32>
    %22 = vector.shape_cast %21 : vector<1x32x32xf32> to vector<32x32xf32>
    %23 = arith.truncf %22 : vector<32x32xf32> to vector<32x32xbf16>
    %cst_18 = arith.constant dense<0.000000e+00> : vector<16x32xf32>
    %24 = tpu.matmul %4, %23, %cst_18 {dimension_numbers = #tpu.dot_dimension_numbers<[1], [0], [0], [1], [0, 0, 1, 1], [], []>} : vector<16x32xbf16>, vector<32x32xbf16>, vector<16x32xf32> -> vector<16x32xf32>
    %c0_19 = arith.constant 0 : index
    %c0_20 = arith.constant 0 : index
    %c0_21 = arith.constant 0 : index
    %25 = vector.load %arg7[%c0_19, %c0_20, %c0_21] : memref<1x1x32xf32, #tpu.memory_space<vmem>>, vector<1x1x32xf32>
    %26 = vector.shape_cast %25 : vector<1x1x32xf32> to vector<1x32xf32>
    %27 = vector.broadcast %26 : vector<1x32xf32> to vector<16x32xf32>
    %28 = arith.addf %24, %27 : vector<16x32xf32>
    %29 = vector.shape_cast %12 : vector<16x32xf32> to vector<2x8x32xf32>
    %30 = arith.truncf %29 : vector<2x8x32xf32> to vector<2x8x32xbf16>
    %31 = vector.shape_cast %20 : vector<16x32xf32> to vector<2x8x32xf32>
    %32 = arith.truncf %31 : vector<2x8x32xf32> to vector<2x8x32xbf16>
    %33 = vector.shape_cast %28 : vector<16x32xf32> to vector<2x8x32xf32>
    %34 = arith.truncf %33 : vector<2x8x32xf32> to vector<2x8x32xbf16>
    %c0_22 = arith.constant 0 : index
    %c0_23 = arith.constant 0 : index
    %c0_24 = arith.constant 0 : index
    %35 = vector.load %arg8[%c0_22, %c0_23, %c0_24] : memref<1x32x32xf32, #tpu.memory_space<vmem>>, vector<1x32x32xf32>
    %36 = vector.shape_cast %35 : vector<1x32x32xf32> to vector<32x32xf32>
    %37 = arith.truncf %36 : vector<32x32xf32> to vector<32x32xbf16>
    %cst_25 = arith.constant 0.000000e+00 : f32
    %38 = vector.broadcast %cst_25 : f32 to vector<16x32xf32>
    %39 = vector.extract_strided_slice %30 {offsets = [0, 0, 0], sizes = [2, 8, 8], strides = [1, 1, 1]} : vector<2x8x32xbf16> to vector<2x8x8xbf16>
    %40 = vector.extract_strided_slice %32 {offsets = [0, 0, 0], sizes = [2, 8, 8], strides = [1, 1, 1]} : vector<2x8x32xbf16> to vector<2x8x8xbf16>
    %41 = vector.extract_strided_slice %34 {offsets = [0, 0, 0], sizes = [2, 8, 8], strides = [1, 1, 1]} : vector<2x8x32xbf16> to vector<2x8x8xbf16>
    "tpu.trace_start"() <{level = 10 : i32, message = "bqd,bkd->bqk"}> : () -> ()
    %cst_26 = arith.constant dense<0.000000e+00> : vector<2x8x8xf32>
    %42 = tpu.matmul %39, %40, %cst_26 {dimension_numbers = #tpu.dot_dimension_numbers<[2], [2], [1], [1], [0, 0, 0, 1, 1, 1], [0], [0]>} : vector<2x8x8xbf16>, vector<2x8x8xbf16>, vector<2x8x8xf32> -> vector<2x8x8xf32>
    "tpu.trace_stop"() : () -> ()
    %cst_27 = arith.constant 0.353553385 : f32
    %43 = vector.broadcast %cst_27 : f32 to vector<2x8x8xf32>
    %44 = arith.mulf %42, %43 : vector<2x8x8xf32>
    %cst_28 = arith.constant dense<0xFF800000> : vector<2x8xf32>
    %45 = vector.multi_reduction <maximumf>, %44, %cst_28 [2] : vector<2x8x8xf32> to vector<2x8xf32>
    %46 = vector.shape_cast %45 : vector<2x8xf32> to vector<2x8x1xf32>
    %47 = vector.broadcast %46 : vector<2x8x1xf32> to vector<2x8x8xf32>
    %48 = arith.subf %44, %47 : vector<2x8x8xf32>
    %49 = math.exp %48 : vector<2x8x8xf32>
    %cst_29 = arith.constant dense<0.000000e+00> : vector<2x8xf32>
    %50 = vector.multi_reduction <add>, %49, %cst_29 [2] : vector<2x8x8xf32> to vector<2x8xf32>
    %51 = vector.shape_cast %50 : vector<2x8xf32> to vector<2x8x1xf32>
    %52 = arith.truncf %49 : vector<2x8x8xf32> to vector<2x8x8xbf16>
    "tpu.trace_start"() <{level = 10 : i32, message = "bqk,bkd->bqd"}> : () -> ()
    %cst_30 = arith.constant dense<0.000000e+00> : vector<2x8x8xf32>
    %53 = tpu.matmul %52, %41, %cst_30 {dimension_numbers = #tpu.dot_dimension_numbers<[2], [1], [1], [2], [0, 0, 0, 1, 1, 2], [0], [0]>} : vector<2x8x8xbf16>, vector<2x8x8xbf16>, vector<2x8x8xf32> -> vector<2x8x8xf32>
    "tpu.trace_stop"() : () -> ()
    %54 = tpu.reciprocal %51 {approx = true} : vector<2x8x1xf32> -> vector<2x8x1xf32>
    %55 = vector.broadcast %54 : vector<2x8x1xf32> to vector<2x8x8xf32>
    %56 = arith.mulf %53, %55 : vector<2x8x8xf32>
    %57 = vector.shape_cast %56 : vector<2x8x8xf32> to vector<16x8xf32>
    %58 = vector.extract_strided_slice %37 {offsets = [0, 0], sizes = [8, 32], strides = [1, 1]} : vector<32x32xbf16> to vector<8x32xbf16>
    %59 = arith.truncf %57 : vector<16x8xf32> to vector<16x8xbf16>
    %cst_31 = arith.constant dense<0.000000e+00> : vector<16x32xf32>
    %60 = tpu.matmul %59, %58, %cst_31 {dimension_numbers = #tpu.dot_dimension_numbers<[1], [0], [0], [1], [0, 0, 1, 1], [], []>} : vector<16x8xbf16>, vector<8x32xbf16>, vector<16x32xf32> -> vector<16x32xf32>
    %61 = arith.addf %38, %60 : vector<16x32xf32>
    %62 = vector.extract_strided_slice %30 {offsets = [0, 0, 8], sizes = [2, 8, 8], strides = [1, 1, 1]} : vector<2x8x32xbf16> to vector<2x8x8xbf16>
    %63 = vector.extract_strided_slice %32 {offsets = [0, 0, 8], sizes = [2, 8, 8], strides = [1, 1, 1]} : vector<2x8x32xbf16> to vector<2x8x8xbf16>
    %64 = vector.extract_strided_slice %34 {offsets = [0, 0, 8], sizes = [2, 8, 8], strides = [1, 1, 1]} : vector<2x8x32xbf16> to vector<2x8x8xbf16>
    "tpu.trace_start"() <{level = 10 : i32, message = "bqd,bkd->bqk"}> : () -> ()
    %cst_32 = arith.constant dense<0.000000e+00> : vector<2x8x8xf32>
    %65 = tpu.matmul %62, %63, %cst_32 {dimension_numbers = #tpu.dot_dimension_numbers<[2], [2], [1], [1], [0, 0, 0, 1, 1, 1], [0], [0]>} : vector<2x8x8xbf16>, vector<2x8x8xbf16>, vector<2x8x8xf32> -> vector<2x8x8xf32>
    "tpu.trace_stop"() : () -> ()
    %cst_33 = arith.constant 0.353553385 : f32
    %66 = vector.broadcast %cst_33 : f32 to vector<2x8x8xf32>
    %67 = arith.mulf %65, %66 : vector<2x8x8xf32>
    %cst_34 = arith.constant dense<0xFF800000> : vector<2x8xf32>
    %68 = vector.multi_reduction <maximumf>, %67, %cst_34 [2] : vector<2x8x8xf32> to vector<2x8xf32>
    %69 = vector.shape_cast %68 : vector<2x8xf32> to vector<2x8x1xf32>
    %70 = vector.broadcast %69 : vector<2x8x1xf32> to vector<2x8x8xf32>
    %71 = arith.subf %67, %70 : vector<2x8x8xf32>
    %72 = math.exp %71 : vector<2x8x8xf32>
    %cst_35 = arith.constant dense<0.000000e+00> : vector<2x8xf32>
    %73 = vector.multi_reduction <add>, %72, %cst_35 [2] : vector<2x8x8xf32> to vector<2x8xf32>
    %74 = vector.shape_cast %73 : vector<2x8xf32> to vector<2x8x1xf32>
    %75 = arith.truncf %72 : vector<2x8x8xf32> to vector<2x8x8xbf16>
    "tpu.trace_start"() <{level = 10 : i32, message = "bqk,bkd->bqd"}> : () -> ()
    %cst_36 = arith.constant dense<0.000000e+00> : vector<2x8x8xf32>
    %76 = tpu.matmul %75, %64, %cst_36 {dimension_numbers = #tpu.dot_dimension_numbers<[2], [1], [1], [2], [0, 0, 0, 1, 1, 2], [0], [0]>} : vector<2x8x8xbf16>, vector<2x8x8xbf16>, vector<2x8x8xf32> -> vector<2x8x8xf32>
    "tpu.trace_stop"() : () -> ()
    %77 = tpu.reciprocal %74 {approx = true} : vector<2x8x1xf32> -> vector<2x8x1xf32>
    %78 = vector.broadcast %77 : vector<2x8x1xf32> to vector<2x8x8xf32>
    %79 = arith.mulf %76, %78 : vector<2x8x8xf32>
    %80 = vector.shape_cast %79 : vector<2x8x8xf32> to vector<16x8xf32>
    %81 = vector.extract_strided_slice %37 {offsets = [8, 0], sizes = [8, 32], strides = [1, 1]} : vector<32x32xbf16> to vector<8x32xbf16>
    %82 = arith.truncf %80 : vector<16x8xf32> to vector<16x8xbf16>
    %cst_37 = arith.constant dense<0.000000e+00> : vector<16x32xf32>
    %83 = tpu.matmul %82, %81, %cst_37 {dimension_numbers = #tpu.dot_dimension_numbers<[1], [0], [0], [1], [0, 0, 1, 1], [], []>} : vector<16x8xbf16>, vector<8x32xbf16>, vector<16x32xf32> -> vector<16x32xf32>
    %84 = arith.addf %61, %83 : vector<16x32xf32>
    %85 = vector.extract_strided_slice %30 {offsets = [0, 0, 16], sizes = [2, 8, 8], strides = [1, 1, 1]} : vector<2x8x32xbf16> to vector<2x8x8xbf16>
    %86 = vector.extract_strided_slice %32 {offsets = [0, 0, 16], sizes = [2, 8, 8], strides = [1, 1, 1]} : vector<2x8x32xbf16> to vector<2x8x8xbf16>
    %87 = vector.extract_strided_slice %34 {offsets = [0, 0, 16], sizes = [2, 8, 8], strides = [1, 1, 1]} : vector<2x8x32xbf16> to vector<2x8x8xbf16>
    "tpu.trace_start"() <{level = 10 : i32, message = "bqd,bkd->bqk"}> : () -> ()
    %cst_38 = arith.constant dense<0.000000e+00> : vector<2x8x8xf32>
    %88 = tpu.matmul %85, %86, %cst_38 {dimension_numbers = #tpu.dot_dimension_numbers<[2], [2], [1], [1], [0, 0, 0, 1, 1, 1], [0], [0]>} : vector<2x8x8xbf16>, vector<2x8x8xbf16>, vector<2x8x8xf32> -> vector<2x8x8xf32>
    "tpu.trace_stop"() : () -> ()
    %cst_39 = arith.constant 0.353553385 : f32
    %89 = vector.broadcast %cst_39 : f32 to vector<2x8x8xf32>
    %90 = arith.mulf %88, %89 : vector<2x8x8xf32>
    %cst_40 = arith.constant dense<0xFF800000> : vector<2x8xf32>
    %91 = vector.multi_reduction <maximumf>, %90, %cst_40 [2] : vector<2x8x8xf32> to vector<2x8xf32>
    %92 = vector.shape_cast %91 : vector<2x8xf32> to vector<2x8x1xf32>
    %93 = vector.broadcast %92 : vector<2x8x1xf32> to vector<2x8x8xf32>
    %94 = arith.subf %90, %93 : vector<2x8x8xf32>
    %95 = math.exp %94 : vector<2x8x8xf32>
    %cst_41 = arith.constant dense<0.000000e+00> : vector<2x8xf32>
    %96 = vector.multi_reduction <add>, %95, %cst_41 [2] : vector<2x8x8xf32> to vector<2x8xf32>
    %97 = vector.shape_cast %96 : vector<2x8xf32> to vector<2x8x1xf32>
    %98 = arith.truncf %95 : vector<2x8x8xf32> to vector<2x8x8xbf16>
    "tpu.trace_start"() <{level = 10 : i32, message = "bqk,bkd->bqd"}> : () -> ()
    %cst_42 = arith.constant dense<0.000000e+00> : vector<2x8x8xf32>
    %99 = tpu.matmul %98, %87, %cst_42 {dimension_numbers = #tpu.dot_dimension_numbers<[2], [1], [1], [2], [0, 0, 0, 1, 1, 2], [0], [0]>} : vector<2x8x8xbf16>, vector<2x8x8xbf16>, vector<2x8x8xf32> -> vector<2x8x8xf32>
    "tpu.trace_stop"() : () -> ()
    %100 = tpu.reciprocal %97 {approx = true} : vector<2x8x1xf32> -> vector<2x8x1xf32>
    %101 = vector.broadcast %100 : vector<2x8x1xf32> to vector<2x8x8xf32>
    %102 = arith.mulf %99, %101 : vector<2x8x8xf32>
    %103 = vector.shape_cast %102 : vector<2x8x8xf32> to vector<16x8xf32>
    %104 = vector.extract_strided_slice %37 {offsets = [16, 0], sizes = [8, 32], strides = [1, 1]} : vector<32x32xbf16> to vector<8x32xbf16>
    %105 = arith.truncf %103 : vector<16x8xf32> to vector<16x8xbf16>
    %cst_43 = arith.constant dense<0.000000e+00> : vector<16x32xf32>
    %106 = tpu.matmul %105, %104, %cst_43 {dimension_numbers = #tpu.dot_dimension_numbers<[1], [0], [0], [1], [0, 0, 1, 1], [], []>} : vector<16x8xbf16>, vector<8x32xbf16>, vector<16x32xf32> -> vector<16x32xf32>
    %107 = arith.addf %84, %106 : vector<16x32xf32>
    %108 = vector.extract_strided_slice %30 {offsets = [0, 0, 24], sizes = [2, 8, 8], strides = [1, 1, 1]} : vector<2x8x32xbf16> to vector<2x8x8xbf16>
    %109 = vector.extract_strided_slice %32 {offsets = [0, 0, 24], sizes = [2, 8, 8], strides = [1, 1, 1]} : vector<2x8x32xbf16> to vector<2x8x8xbf16>
    %110 = vector.extract_strided_slice %34 {offsets = [0, 0, 24], sizes = [2, 8, 8], strides = [1, 1, 1]} : vector<2x8x32xbf16> to vector<2x8x8xbf16>
    "tpu.trace_start"() <{level = 10 : i32, message = "bqd,bkd->bqk"}> : () -> ()
    %cst_44 = arith.constant dense<0.000000e+00> : vector<2x8x8xf32>
    %111 = tpu.matmul %108, %109, %cst_44 {dimension_numbers = #tpu.dot_dimension_numbers<[2], [2], [1], [1], [0, 0, 0, 1, 1, 1], [0], [0]>} : vector<2x8x8xbf16>, vector<2x8x8xbf16>, vector<2x8x8xf32> -> vector<2x8x8xf32>
    "tpu.trace_stop"() : () -> ()
    %cst_45 = arith.constant 0.353553385 : f32
    %112 = vector.broadcast %cst_45 : f32 to vector<2x8x8xf32>
    %113 = arith.mulf %111, %112 : vector<2x8x8xf32>
    %cst_46 = arith.constant dense<0xFF800000> : vector<2x8xf32>
    %114 = vector.multi_reduction <maximumf>, %113, %cst_46 [2] : vector<2x8x8xf32> to vector<2x8xf32>
    %115 = vector.shape_cast %114 : vector<2x8xf32> to vector<2x8x1xf32>
    %116 = vector.broadcast %115 : vector<2x8x1xf32> to vector<2x8x8xf32>
    %117 = arith.subf %113, %116 : vector<2x8x8xf32>
    %118 = math.exp %117 : vector<2x8x8xf32>
    %cst_47 = arith.constant dense<0.000000e+00> : vector<2x8xf32>
    %119 = vector.multi_reduction <add>, %118, %cst_47 [2] : vector<2x8x8xf32> to vector<2x8xf32>
    %120 = vector.shape_cast %119 : vector<2x8xf32> to vector<2x8x1xf32>
    %121 = arith.truncf %118 : vector<2x8x8xf32> to vector<2x8x8xbf16>
    "tpu.trace_start"() <{level = 10 : i32, message = "bqk,bkd->bqd"}> : () -> ()
    %cst_48 = arith.constant dense<0.000000e+00> : vector<2x8x8xf32>
    %122 = tpu.matmul %121, %110, %cst_48 {dimension_numbers = #tpu.dot_dimension_numbers<[2], [1], [1], [2], [0, 0, 0, 1, 1, 2], [0], [0]>} : vector<2x8x8xbf16>, vector<2x8x8xbf16>, vector<2x8x8xf32> -> vector<2x8x8xf32>
    "tpu.trace_stop"() : () -> ()
    %123 = tpu.reciprocal %120 {approx = true} : vector<2x8x1xf32> -> vector<2x8x1xf32>
    %124 = vector.broadcast %123 : vector<2x8x1xf32> to vector<2x8x8xf32>
    %125 = arith.mulf %122, %124 : vector<2x8x8xf32>
    %126 = vector.shape_cast %125 : vector<2x8x8xf32> to vector<16x8xf32>
    %127 = vector.extract_strided_slice %37 {offsets = [24, 0], sizes = [8, 32], strides = [1, 1]} : vector<32x32xbf16> to vector<8x32xbf16>
    %128 = arith.truncf %126 : vector<16x8xf32> to vector<16x8xbf16>
    %cst_49 = arith.constant dense<0.000000e+00> : vector<16x32xf32>
    %129 = tpu.matmul %128, %127, %cst_49 {dimension_numbers = #tpu.dot_dimension_numbers<[1], [0], [0], [1], [0, 0, 1, 1], [], []>} : vector<16x8xbf16>, vector<8x32xbf16>, vector<16x32xf32> -> vector<16x32xf32>
    %130 = arith.addf %107, %129 : vector<16x32xf32>
    %c0_50 = arith.constant 0 : index
    %c0_51 = arith.constant 0 : index
    %c0_52 = arith.constant 0 : index
    %131 = vector.load %arg9[%c0_50, %c0_51, %c0_52] : memref<1x1x32xf32, #tpu.memory_space<vmem>>, vector<1x1x32xf32>
    %132 = vector.shape_cast %131 : vector<1x1x32xf32> to vector<1x32xf32>
    %133 = vector.broadcast %132 : vector<1x32xf32> to vector<16x32xf32>
    %134 = arith.addf %130, %133 : vector<16x32xf32>
    %135 = arith.addf %3, %134 : vector<16x32xf32>
    %cst_53 = arith.constant dense<0.000000e+00> : vector<16xf32>
    %136 = vector.multi_reduction <add>, %135, %cst_53 [1] : vector<16x32xf32> to vector<16xf32>
    %137 = vector.shape_cast %136 : vector<16xf32> to vector<16x1xf32>
    %cst_54 = arith.constant 3.200000e+01 : f32
    %138 = vector.broadcast %cst_54 : f32 to vector<16x1xf32>
    %139 = arith.divf %137, %138 : vector<16x1xf32>
    %140 = vector.broadcast %139 : vector<16x1xf32> to vector<16x32xf32>
    %141 = arith.subf %135, %140 : vector<16x32xf32>
    %142 = arith.mulf %141, %141 : vector<16x32xf32>
    %cst_55 = arith.constant dense<0.000000e+00> : vector<16xf32>
    %143 = vector.multi_reduction <add>, %142, %cst_55 [1] : vector<16x32xf32> to vector<16xf32>
    %144 = vector.shape_cast %143 : vector<16xf32> to vector<16x1xf32>
    %cst_56 = arith.constant 3.200000e+01 : f32
    %145 = vector.broadcast %cst_56 : f32 to vector<16x1xf32>
    %146 = arith.divf %144, %145 : vector<16x1xf32>
    %147 = vector.broadcast %139 : vector<16x1xf32> to vector<16x32xf32>
    %148 = arith.subf %135, %147 : vector<16x32xf32>
    %cst_57 = arith.constant 9.99999974E-6 : f32
    %149 = vector.broadcast %cst_57 : f32 to vector<16x1xf32>
    %150 = arith.addf %146, %149 : vector<16x1xf32>
    %151 = math.rsqrt %150 : vector<16x1xf32>
    %152 = vector.broadcast %151 : vector<16x1xf32> to vector<16x32xf32>
    %153 = arith.mulf %148, %152 : vector<16x32xf32>
    %c0_58 = arith.constant 0 : index
    %c0_59 = arith.constant 0 : index
    %c0_60 = arith.constant 0 : index
    %154 = vector.load %arg10[%c0_58, %c0_59, %c0_60] : memref<1x1x32xf32, #tpu.memory_space<vmem>>, vector<1x1x32xf32>
    %155 = vector.shape_cast %154 : vector<1x1x32xf32> to vector<1x32xf32>
    %156 = vector.broadcast %155 : vector<1x32xf32> to vector<16x32xf32>
    %157 = arith.mulf %153, %156 : vector<16x32xf32>
    %c0_61 = arith.constant 0 : index
    %c0_62 = arith.constant 0 : index
    %c0_63 = arith.constant 0 : index
    %158 = vector.load %arg11[%c0_61, %c0_62, %c0_63] : memref<1x1x32xf32, #tpu.memory_space<vmem>>, vector<1x1x32xf32>
    %159 = vector.shape_cast %158 : vector<1x1x32xf32> to vector<1x32xf32>
    %160 = vector.broadcast %159 : vector<1x32xf32> to vector<16x32xf32>
    %161 = arith.addf %157, %160 : vector<16x32xf32>
    %c0_64 = arith.constant 0 : index
    %c0_65 = arith.constant 0 : index
    %c0_66 = arith.constant 0 : index
    %162 = vector.load %arg12[%c0_64, %c0_65, %c0_66] : memref<1x32x64xf32, #tpu.memory_space<vmem>>, vector<1x32x64xf32>
    %163 = vector.shape_cast %162 : vector<1x32x64xf32> to vector<32x64xf32>
    %164 = arith.truncf %161 : vector<16x32xf32> to vector<16x32xbf16>
    %165 = arith.truncf %163 : vector<32x64xf32> to vector<32x64xbf16>
    %cst_67 = arith.constant dense<0.000000e+00> : vector<16x64xf32>
    %166 = tpu.matmul %164, %165, %cst_67 {dimension_numbers = #tpu.dot_dimension_numbers<[1], [0], [0], [1], [0, 0, 1, 1], [], []>} : vector<16x32xbf16>, vector<32x64xbf16>, vector<16x64xf32> -> vector<16x64xf32>
    %c0_68 = arith.constant 0 : index
    %c0_69 = arith.constant 0 : index
    %c0_70 = arith.constant 0 : index
    %167 = vector.load %arg13[%c0_68, %c0_69, %c0_70] : memref<1x1x64xf32, #tpu.memory_space<vmem>>, vector<1x1x64xf32>
    %168 = vector.shape_cast %167 : vector<1x1x64xf32> to vector<1x64xf32>
    %169 = vector.broadcast %168 : vector<1x64xf32> to vector<16x64xf32>
    %170 = arith.addf %166, %169 : vector<16x64xf32>
    %cst_71 = arith.constant 0.000000e+00 : f32
    %171 = vector.broadcast %cst_71 : f32 to vector<16x64xf32>
    %172 = arith.maximumf %170, %171 : vector<16x64xf32>
    %c0_72 = arith.constant 0 : index
    %c0_73 = arith.constant 0 : index
    %c0_74 = arith.constant 0 : index
    %173 = vector.load %arg14[%c0_72, %c0_73, %c0_74] : memref<1x64x32xf32, #tpu.memory_space<vmem>>, vector<1x64x32xf32>
    %174 = vector.shape_cast %173 : vector<1x64x32xf32> to vector<64x32xf32>
    %175 = arith.truncf %172 : vector<16x64xf32> to vector<16x64xbf16>
    %176 = arith.truncf %174 : vector<64x32xf32> to vector<64x32xbf16>
    %cst_75 = arith.constant dense<0.000000e+00> : vector<16x32xf32>
    %177 = tpu.matmul %175, %176, %cst_75 {dimension_numbers = #tpu.dot_dimension_numbers<[1], [0], [0], [1], [0, 0, 1, 1], [], []>} : vector<16x64xbf16>, vector<64x32xbf16>, vector<16x32xf32> -> vector<16x32xf32>
    %c0_76 = arith.constant 0 : index
    %c0_77 = arith.constant 0 : index
    %c0_78 = arith.constant 0 : index
    %178 = vector.load %arg15[%c0_76, %c0_77, %c0_78] : memref<1x1x32xf32, #tpu.memory_space<vmem>>, vector<1x1x32xf32>
    %179 = vector.shape_cast %178 : vector<1x1x32xf32> to vector<1x32xf32>
    %180 = vector.broadcast %179 : vector<1x32xf32> to vector<16x32xf32>
    %181 = arith.addf %177, %180 : vector<16x32xf32>
    %182 = arith.addf %161, %181 : vector<16x32xf32>
    %cst_79 = arith.constant dense<0.000000e+00> : vector<16xf32>
    %183 = vector.multi_reduction <add>, %182, %cst_79 [1] : vector<16x32xf32> to vector<16xf32>
    %184 = vector.shape_cast %183 : vector<16xf32> to vector<16x1xf32>
    %cst_80 = arith.constant 3.200000e+01 : f32
    %185 = vector.broadcast %cst_80 : f32 to vector<16x1xf32>
    %186 = arith.divf %184, %185 : vector<16x1xf32>
    %187 = vector.broadcast %186 : vector<16x1xf32> to vector<16x32xf32>
    %188 = arith.subf %182, %187 : vector<16x32xf32>
    %189 = arith.mulf %188, %188 : vector<16x32xf32>
    %cst_81 = arith.constant dense<0.000000e+00> : vector<16xf32>
    %190 = vector.multi_reduction <add>, %189, %cst_81 [1] : vector<16x32xf32> to vector<16xf32>
    %191 = vector.shape_cast %190 : vector<16xf32> to vector<16x1xf32>
    %cst_82 = arith.constant 3.200000e+01 : f32
    %192 = vector.broadcast %cst_82 : f32 to vector<16x1xf32>
    %193 = arith.divf %191, %192 : vector<16x1xf32>
    %194 = vector.broadcast %186 : vector<16x1xf32> to vector<16x32xf32>
    %195 = arith.subf %182, %194 : vector<16x32xf32>
    %cst_83 = arith.constant 9.99999974E-6 : f32
    %196 = vector.broadcast %cst_83 : f32 to vector<16x1xf32>
    %197 = arith.addf %193, %196 : vector<16x1xf32>
    %198 = math.rsqrt %197 : vector<16x1xf32>
    %199 = vector.broadcast %198 : vector<16x1xf32> to vector<16x32xf32>
    %200 = arith.mulf %195, %199 : vector<16x32xf32>
    %c0_84 = arith.constant 0 : index
    %c0_85 = arith.constant 0 : index
    %c0_86 = arith.constant 0 : index
    %201 = vector.load %arg16[%c0_84, %c0_85, %c0_86] : memref<1x1x32xf32, #tpu.memory_space<vmem>>, vector<1x1x32xf32>
    %202 = vector.shape_cast %201 : vector<1x1x32xf32> to vector<1x32xf32>
    %203 = vector.broadcast %202 : vector<1x32xf32> to vector<16x32xf32>
    %204 = arith.mulf %200, %203 : vector<16x32xf32>
    %c0_87 = arith.constant 0 : index
    %c0_88 = arith.constant 0 : index
    %c0_89 = arith.constant 0 : index
    %205 = vector.load %arg17[%c0_87, %c0_88, %c0_89] : memref<1x1x32xf32, #tpu.memory_space<vmem>>, vector<1x1x32xf32>
    %206 = vector.shape_cast %205 : vector<1x1x32xf32> to vector<1x32xf32>
    %207 = vector.broadcast %206 : vector<1x32xf32> to vector<16x32xf32>
    %208 = arith.addf %204, %207 : vector<16x32xf32>
    %c0_90 = arith.constant 0 : index
    %c0_91 = arith.constant 0 : index
    %209 = vector.load %arg18[%c0_90, %c0_91] : memref<16x32xf32, #tpu.memory_space<vmem>>, vector<16x32xf32>
    tpu.vector_store %arg18[%c0_90, %c0_91], %208 {strides = array<i32>} : memref<16x32xf32, #tpu.memory_space<vmem>>, vector<16x32xf32>,
    return
  }
  func.func @transform_0(%arg0: i32) -> (i32, i32) {
    %c0_i32 = arith.constant 0 : i32
    %c0_i32_0 = arith.constant 0 : i32
    %c0_i32_1 = arith.constant 0 : i32
    return %c0_i32, %c0_i32_0 : i32, i32
  }
  func.func @transform_1(%arg0: i32) -> (i32, i32, i32) {
    %c0_i32 = arith.constant 0 : i32
    %c0_i32_0 = arith.constant 0 : i32
    %c0_i32_1 = arith.constant 0 : i32
    return %arg0, %c0_i32, %c0_i32_0 : i32, i32, i32
  }
  func.func @transform_2(%arg0: i32) -> (i32, i32, i32) {
    %c0_i32 = arith.constant 0 : i32
    %c0_i32_0 = arith.constant 0 : i32
    %c0_i32_1 = arith.constant 0 : i32
    return %arg0, %c0_i32, %c0_i32_0 : i32, i32, i32
  }
  func.func @transform_3(%arg0: i32) -> (i32, i32, i32) {
    %c0_i32 = arith.constant 0 : i32
    %c0_i32_0 = arith.constant 0 : i32
    %c0_i32_1 = arith.constant 0 : i32
    return %arg0, %c0_i32, %c0_i32_0 : i32, i32, i32
  }
  func.func @transform_4(%arg0: i32) -> (i32, i32, i32) {
    %c0_i32 = arith.constant 0 : i32
    %c0_i32_0 = arith.constant 0 : i32
    %c0_i32_1 = arith.constant 0 : i32
    return %arg0, %c0_i32, %c0_i32_0 : i32, i32, i32
  }
  func.func @transform_5(%arg0: i32) -> (i32, i32, i32) {
    %c0_i32 = arith.constant 0 : i32
    %c0_i32_0 = arith.constant 0 : i32
    %c0_i32_1 = arith.constant 0 : i32
    return %arg0, %c0_i32, %c0_i32_0 : i32, i32, i32
  }
  func.func @transform_6(%arg0: i32) -> (i32, i32, i32) {
    %c0_i32 = arith.constant 0 : i32
    %c0_i32_0 = arith.constant 0 : i32
    %c0_i32_1 = arith.constant 0 : i32
    return %arg0, %c0_i32, %c0_i32_0 : i32, i32, i32
  }
  func.func @transform_7(%arg0: i32) -> (i32, i32, i32) {
    %c0_i32 = arith.constant 0 : i32
    %c0_i32_0 = arith.constant 0 : i32
    %c0_i32_1 = arith.constant 0 : i32
    return %arg0, %c0_i32, %c0_i32_0 : i32, i32, i32
  }
  func.func @transform_8(%arg0: i32) -> (i32, i32, i32) {
    %c0_i32 = arith.constant 0 : i32
    %c0_i32_0 = arith.constant 0 : i32
    %c0_i32_1 = arith.constant 0 : i32
    return %arg0, %c0_i32, %c0_i32_0 : i32, i32, i32
  }
  func.func @transform_9(%arg0: i32) -> (i32, i32, i32) {
    %c0_i32 = arith.constant 0 : i32
    %c0_i32_0 = arith.constant 0 : i32
    %c0_i32_1 = arith.constant 0 : i32
    return %arg0, %c0_i32, %c0_i32_0 : i32, i32, i32
  }
  func.func @transform_10(%arg0: i32) -> (i32, i32, i32) {
    %c0_i32 = arith.constant 0 : i32
    %c0_i32_0 = arith.constant 0 : i32
    %c0_i32_1 = arith.constant 0 : i32
    return %arg0, %c0_i32, %c0_i32_0 : i32, i32, i32
  }
  func.func @transform_11(%arg0: i32) -> (i32, i32, i32) {
    %c0_i32 = arith.constant 0 : i32
    %c0_i32_0 = arith.constant 0 : i32
    %c0_i32_1 = arith.constant 0 : i32
    return %arg0, %c0_i32, %c0_i32_0 : i32, i32, i32
  }
  func.func @transform_12(%arg0: i32) -> (i32, i32, i32) {
    %c0_i32 = arith.constant 0 : i32
    %c0_i32_0 = arith.constant 0 : i32
    %c0_i32_1 = arith.constant 0 : i32
    return %arg0, %c0_i32, %c0_i32_0 : i32, i32, i32
  }
  func.func @transform_13(%arg0: i32) -> (i32, i32, i32) {
    %c0_i32 = arith.constant 0 : i32
    %c0_i32_0 = arith.constant 0 : i32
    %c0_i32_1 = arith.constant 0 : i32
    return %arg0, %c0_i32, %c0_i32_0 : i32, i32, i32
  }
  func.func @transform_14(%arg0: i32) -> (i32, i32, i32) {
    %c0_i32 = arith.constant 0 : i32
    %c0_i32_0 = arith.constant 0 : i32
    %c0_i32_1 = arith.constant 0 : i32
    return %arg0, %c0_i32, %c0_i32_0 : i32, i32, i32
  }
  func.func @transform_15(%arg0: i32) -> (i32, i32, i32) {
    %c0_i32 = arith.constant 0 : i32
    %c0_i32_0 = arith.constant 0 : i32
    %c0_i32_1 = arith.constant 0 : i32
    return %arg0, %c0_i32, %c0_i32_0 : i32, i32, i32
  }
  func.func @transform_16(%arg0: i32) -> (i32, i32, i32) {
    %c0_i32 = arith.constant 0 : i32
    %c0_i32_0 = arith.constant 0 : i32
    %c0_i32_1 = arith.constant 0 : i32
    return %arg0, %c0_i32, %c0_i32_0 : i32, i32, i32
  }
  func.func @transform_17(%arg0: i32) -> (i32, i32) {
    %c0_i32 = arith.constant 0 : i32
    %c0_i32_0 = arith.constant 0 : i32
    %c0_i32_1 = arith.constant 0 : i32
    return %c0_i32, %c0_i32_0 : i32, i32
  }
}

</mosaic_0001>

<llo_original>
// kernel: tpu_custom_call.1
$region0: #{tpu_custom_call.1}
  #allocation0 [shape = 'u32[]', space=smem, size = 0x4, offset = 0x4, fixed_abs, tag = 'smem constant byte address 0x4 - core index']
  #allocation1 [shape = 'u32[144,128]{1,0:T(1,128)}', space=vmem, size = 0x12000, scoped, tag = 'internal scratch']
  %s0 = inlined_call_operand.hbm [shape: f32[16,32], index: 0, kind: input, shape index: {}]
  %s1 = inlined_call_operand.vmem [shape: f32[2,32,32], index: 1, kind: input, shape index: {}]
  %s2 = inlined_call_operand.vmem [shape: f32[2,1,32], index: 2, kind: input, shape index: {}]
  %s3 = inlined_call_operand.vmem [shape: f32[2,32,32], index: 3, kind: input, shape index: {}]
  %s4 = inlined_call_operand.vmem [shape: f32[2,1,32], index: 4, kind: input, shape index: {}]
  %s5 = inlined_call_operand.vmem [shape: f32[2,32,32], index: 5, kind: input, shape index: {}]
  %s6 = inlined_call_operand.vmem [shape: f32[2,1,32], index: 6, kind: input, shape index: {}]
  %s7 = inlined_call_operand.hbm [shape: f32[2,32,32], index: 7, kind: input, shape index: {}]
  %s8 = inlined_call_operand.vmem [shape: f32[2,1,32], index: 8, kind: input, shape index: {}]
  %s9 = inlined_call_operand.vmem [shape: f32[2,1,32], index: 9, kind: input, shape index: {}]
  %s10 = inlined_call_operand.vmem [shape: f32[2,1,32], index: 10, kind: input, shape index: {}]
  %s11 = inlined_call_operand.hbm [shape: f32[2,32,64], index: 11, kind: input, shape index: {}]
  %s12 = inlined_call_operand.vmem [shape: f32[2,1,64], index: 12, kind: input, shape index: {}]
  %s13 = inlined_call_operand.vmem [shape: f32[2,64,32], index: 13, kind: input, shape index: {}]
  %s14 = inlined_call_operand.vmem [shape: f32[2,1,32], index: 14, kind: input, shape index: {}]
  %s15 = inlined_call_operand.vmem [shape: f32[2,1,32], index: 15, kind: input, shape index: {}]
  %s16 = inlined_call_operand.vmem [shape: f32[2,1,32], index: 16, kind: input, shape index: {}]
  %s17 = inlined_call_operand.hbm [shape: f32[16,32], index: 17, kind: output, shape index: {}]
  %s18 = sld [smem:[#allocation0]]
  $region117: #{tpu_custom_call.1} parent=0
    _
  %s20 = ssub.s32 1, %s18
  %s21 = scalar_select 0, %s20, %s18
  $region1: #{tpu_custom_call.1} parent=0
    #allocation2 [shape = 'u8[8192]{0}', space=vmem, size = 0x2000, scoped, tag = 'input window, operand 0, single buffered']
    #allocation3 [shape = 's32[2]{0}', space=sflag, size = 0x8, scoped, tag = 'scoped memory for tpu_custom_call.1']
    #allocation4 [shape = 's32[2]{0}', space=sflag, size = 0x8, scoped, tag = 'scoped memory for tpu_custom_call.1']
    #allocation5 [shape = 'u8[32768]{0}', space=vmem, size = 0x8000, scoped, tag = 'input window, operand 7']
    #allocation6 [shape = 's32[2]{0}', space=sflag, size = 0x8, scoped, tag = 'scoped memory for tpu_custom_call.1']
    #allocation7 [shape = 'u8[32768]{0}', space=vmem, size = 0x8000, scoped, tag = 'input window, operand 11']
    #allocation8 [shape = 'u8[8192]{0}', space=vmem, size = 0x2000, scoped, tag = 'output window, operand 0, single buffered']
    %22 = vsyncpa [#allocation3], 0
    %23 = vsyncpa [#allocation6], 0
    %s24 = scalar_lea.sflag [#allocation6], 1
    %25 = vsyncpa %s24, 0
    %26 = vsyncpa [#allocation4], 0
    loop: start=0, step=1, limit=4
    $region2: #{tpu_custom_call.1} parent=1 // loop_pre_header
      _
    $region3: #{tpu_custom_call.1} parent=1 // loop_header
      %s28 = sphi 0, %s32
      %p29 = scmp.ge.s32.totalorder %s28, 4
      %s36 = sphi 0, %s36
      %s38 = sphi 0, %s36
      %s39 = sphi 0, %s38
      %s53 = sphi 0, %s39
      %s59 = sphi 0, %s61
      %s62 = sphi 0, %s59
      %s63 = sphi 0, %s62
      %s79 = sphi 0, %s63
      %s85 = sphi 0, %s87
      %s88 = sphi 0, %s85
      %s89 = sphi 0, %s88
      %s105 = sphi 0, %s89
      %s111 = sphi 0, %s113
      %s114 = sphi 0, %s111
      %s115 = sphi 0, %s114
      %s131 = sphi 0, %s115
      %s137 = sphi 0, %s139
      %s140 = sphi 0, %s137
      %s141 = sphi 0, %s140
      %s157 = sphi 0, %s141
      %s163 = sphi 0, %s165
      %s166 = sphi 0, %s163
      %s167 = sphi 0, %s166
      %s183 = sphi 0, %s167
      %s189 = sphi 0, %s191
      %s192 = sphi 0, %s189
      %s193 = sphi 0, %s192
      %s209 = sphi 0, %s193
      %s215 = sphi 0, %s217
      %s218 = sphi 0, %s215
      %s219 = sphi 0, %s218
      %s235 = sphi 0, %s219
      %s241 = sphi 0, %s243
      %s244 = sphi 0, %s241
      %s245 = sphi 0, %s244
      %s261 = sphi 0, %s245
      %s267 = sphi 0, %s269
      %s270 = sphi 0, %s267
      %s271 = sphi 0, %s270
      %s287 = sphi 0, %s271
      %s293 = sphi 0, %s295
      %s296 = sphi 0, %s293
      %s297 = sphi 0, %s296
      %s313 = sphi 0, %s297
      %s319 = sphi 0, %s321
      %s322 = sphi 0, %s319
      %s323 = sphi 0, %s322
      %s339 = sphi 0, %s323
      %s345 = sphi 0, %s347
      %s348 = sphi 0, %s345
      %s349 = sphi 0, %s348
      %s365 = sphi 0, %s349
      %s371 = sphi 0, %s373
      %s374 = sphi 0, %s371
      %s375 = sphi 0, %s374
      %s391 = sphi 0, %s375
      %s397 = sphi 0, %s399
      %s400 = sphi 0, %s397
      %s401 = sphi 0, %s400
      %s417 = sphi 0, %s401
      %s423 = sphi 0, %s425
      %s426 = sphi 0, %s423
      %s427 = sphi 0, %s426
      %s443 = sphi 0, %s427
      %s449 = sphi 0, %s451
      %s452 = sphi 0, %s449
      %s453 = sphi 0, %s452
      %s469 = sphi 0, %s453
      %s473 = sphi 0, %s473
      %s475 = sphi 0, %s473
      %s476 = sphi 0, %s475
      %s490 = sphi 0, %s476
    $region4: #{tpu_custom_call.1} parent=1 // loop_header_branch
      %31 = sbr.rel (%p29) target = $region8
    $region5: #{tpu_custom_call.1} parent=1 // loop_body
      %s33 = ssub.s32 %s28, 1
      %s34 = ssub.s32 %s28, 2
      %s35 = sadd.s32 %s28, 1
      %s37 = sadd.s32 %s36, 1
      %p40 = scmp.eq.s32.totalorder %s28, 1
      %p41 = scmp.ne.s32.totalorder %s36, %s38
      %p42 = scmp.eq.s32.totalorder %s28, 0
      %p43 = por %p41, %p42
      %p44 = scmp.ne.s32.totalorder %s36, %s38
      %p45 = scmp.eq.s32.totalorder %s33, 1
      %p46 = por %p44, %p45
      %p47 = scmp.ne.s32.totalorder %s38, %s39
      %p48 = scmp.eq.s32.totalorder %s33, 0
      %p49 = por %p47, %p48
      %p50 = scmp.ne.s32.totalorder %s38, %s39
      %p51 = scmp.eq.s32.totalorder %s34, 1
      %p52 = por %p50, %p51
      %p54 = scmp.ne.s32.totalorder %s39, %s53
      %p55 = scmp.eq.s32.totalorder %s34, 0
      %p56 = por %p54, %p55
      %s57 = ssub.s32 %s28, %s35
      %p58 = scmp.eq.s32.totalorder %s57, 0
      %s60 = sadd.s32 %s59, 1
      %s61 = scalar_select %p58, %s59, %s60
      %p64 = pneg %p58
      %p65 = scmp.eq.s32.totalorder %s28, 1
      %p66 = por %p64, %p65
      %p67 = scmp.ne.s32.totalorder %s59, %s62
      %p68 = scmp.eq.s32.totalorder %s28, 0
      %p69 = por %p67, %p68
      %p70 = scmp.ne.s32.totalorder %s59, %s62
      %p71 = scmp.eq.s32.totalorder %s33, 1
      %p72 = por %p70, %p71
      %p73 = scmp.ne.s32.totalorder %s62, %s63
      %p74 = scmp.eq.s32.totalorder %s33, 0
      %p75 = por %p73, %p74
      %p76 = scmp.ne.s32.totalorder %s62, %s63
      %p77 = scmp.eq.s32.totalorder %s34, 1
      %p78 = por %p76, %p77
      %p80 = scmp.ne.s32.totalorder %s63, %s79
      %p81 = scmp.eq.s32.totalorder %s34, 0
      %p82 = por %p80, %p81
      %s83 = ssub.s32 %s28, %s35
      %p84 = scmp.eq.s32.totalorder %s83, 0
      %s86 = sadd.s32 %s85, 1
      %s87 = scalar_select %p84, %s85, %s86
      %p90 = pneg %p84
      %p91 = scmp.eq.s32.totalorder %s28, 1
      %p92 = por %p90, %p91
      %p93 = scmp.ne.s32.totalorder %s85, %s88
      %p94 = scmp.eq.s32.totalorder %s28, 0
      %p95 = por %p93, %p94
      %p96 = scmp.ne.s32.totalorder %s85, %s88
      %p97 = scmp.eq.s32.totalorder %s33, 1
      %p98 = por %p96, %p97
      %p99 = scmp.ne.s32.totalorder %s88, %s89
      %p100 = scmp.eq.s32.totalorder %s33, 0
      %p101 = por %p99, %p100
      %p102 = scmp.ne.s32.totalorder %s88, %s89
      %p103 = scmp.eq.s32.totalorder %s34, 1
      %p104 = por %p102, %p103
      %p106 = scmp.ne.s32.totalorder %s89, %s105
      %p107 = scmp.eq.s32.totalorder %s34, 0
      %p108 = por %p106, %p107
      %s109 = ssub.s32 %s28, %s35
      %p110 = scmp.eq.s32.totalorder %s109, 0
      %s112 = sadd.s32 %s111, 1
      %s113 = scalar_select %p110, %s111, %s112
      %p116 = pneg %p110
      %p117 = scmp.eq.s32.totalorder %s28, 1
      %p118 = por %p116, %p117
      %p119 = scmp.ne.s32.totalorder %s111, %s114
      %p120 = scmp.eq.s32.totalorder %s28, 0
      %p121 = por %p119, %p120
      %p122 = scmp.ne.s32.totalorder %s111, %s114
      %p123 = scmp.eq.s32.totalorder %s33, 1
      %p124 = por %p122, %p123
      %p125 = scmp.ne.s32.totalorder %s114, %s115
      %p126 = scmp.eq.s32.totalorder %s33, 0
      %p127 = por %p125, %p126
      %p128 = scmp.ne.s32.totalorder %s114, %s115
      %p129 = scmp.eq.s32.totalorder %s34, 1
      %p130 = por %p128, %p129
      %p132 = scmp.ne.s32.totalorder %s115, %s131
      %p133 = scmp.eq.s32.totalorder %s34, 0
      %p134 = por %p132, %p133
      %s135 = ssub.s32 %s28, %s35
      %p136 = scmp.eq.s32.totalorder %s135, 0
      %s138 = sadd.s32 %s137, 1
      %s139 = scalar_select %p136, %s137, %s138
      %p142 = pneg %p136
      %p143 = scmp.eq.s32.totalorder %s28, 1
      %p144 = por %p142, %p143
      %p145 = scmp.ne.s32.totalorder %s137, %s140
      %p146 = scmp.eq.s32.totalorder %s28, 0
      %p147 = por %p145, %p146
      %p148 = scmp.ne.s32.totalorder %s137, %s140
      %p149 = scmp.eq.s32.totalorder %s33, 1
      %p150 = por %p148, %p149
      %p151 = scmp.ne.s32.totalorder %s140, %s141
      %p152 = scmp.eq.s32.totalorder %s33, 0
      %p153 = por %p151, %p152
      %p154 = scmp.ne.s32.totalorder %s140, %s141
      %p155 = scmp.eq.s32.totalorder %s34, 1
      %p156 = por %p154, %p155
      %p158 = scmp.ne.s32.totalorder %s141, %s157
      %p159 = scmp.eq.s32.totalorder %s34, 0
      %p160 = por %p158, %p159
      %s161 = ssub.s32 %s28, %s35
      %p162 = scmp.eq.s32.totalorder %s161, 0
      %s164 = sadd.s32 %s163, 1
      %s165 = scalar_select %p162, %s163, %s164
      %p168 = pneg %p162
      %p169 = scmp.eq.s32.totalorder %s28, 1
      %p170 = por %p168, %p169
      %p171 = scmp.ne.s32.totalorder %s163, %s166
      %p172 = scmp.eq.s32.totalorder %s28, 0
      %p173 = por %p171, %p172
      %p174 = scmp.ne.s32.totalorder %s163, %s166
      %p175 = scmp.eq.s32.totalorder %s33, 1
      %p176 = por %p174, %p175
      %p177 = scmp.ne.s32.totalorder %s166, %s167
      %p178 = scmp.eq.s32.totalorder %s33, 0
      %p179 = por %p177, %p178
      %p180 = scmp.ne.s32.totalorder %s166, %s167
      %p181 = scmp.eq.s32.totalorder %s34, 1
      %p182 = por %p180, %p181
      %p184 = scmp.ne.s32.totalorder %s167, %s183
      %p185 = scmp.eq.s32.totalorder %s34, 0
      %p186 = por %p184, %p185
      %s187 = ssub.s32 %s28, %s35
      %p188 = scmp.eq.s32.totalorder %s187, 0
      %s190 = sadd.s32 %s189, 1
      %s191 = scalar_select %p188, %s189, %s190
      %p194 = pneg %p188
      %p195 = scmp.eq.s32.totalorder %s28, 1
      %p196 = por %p194, %p195
      %p197 = scmp.ne.s32.totalorder %s189, %s192
      %p198 = scmp.eq.s32.totalorder %s28, 0
      %p199 = por %p197, %p198
      %p200 = scmp.ne.s32.totalorder %s189, %s192
      %p201 = scmp.eq.s32.totalorder %s33, 1
      %p202 = por %p200, %p201
      %p203 = scmp.ne.s32.totalorder %s192, %s193
      %p204 = scmp.eq.s32.totalorder %s33, 0
      %p205 = por %p203, %p204
      %p206 = scmp.ne.s32.totalorder %s192, %s193
      %p207 = scmp.eq.s32.totalorder %s34, 1
      %p208 = por %p206, %p207
      %p210 = scmp.ne.s32.totalorder %s193, %s209
      %p211 = scmp.eq.s32.totalorder %s34, 0
      %p212 = por %p210, %p211
      %s213 = ssub.s32 %s28, %s35
      %p214 = scmp.eq.s32.totalorder %s213, 0
      %s216 = sadd.s32 %s215, 1
      %s217 = scalar_select %p214, %s215, %s216
      %p220 = pneg %p214
      %p221 = scmp.eq.s32.totalorder %s28, 1
      %p222 = por %p220, %p221
      %p223 = scmp.ne.s32.totalorder %s215, %s218
      %p224 = scmp.eq.s32.totalorder %s28, 0
      %p225 = por %p223, %p224
      %p226 = scmp.ne.s32.totalorder %s215, %s218
      %p227 = scmp.eq.s32.totalorder %s33, 1
      %p228 = por %p226, %p227
      %p229 = scmp.ne.s32.totalorder %s218, %s219
      %p230 = scmp.eq.s32.totalorder %s33, 0
      %p231 = por %p229, %p230
      %p232 = scmp.ne.s32.totalorder %s218, %s219
      %p233 = scmp.eq.s32.totalorder %s34, 1
      %p234 = por %p232, %p233
      %p236 = scmp.ne.s32.totalorder %s219, %s235
      %p237 = scmp.eq.s32.totalorder %s34, 0
      %p238 = por %p236, %p237
      %s239 = ssub.s32 %s28, %s35
      %p240 = scmp.eq.s32.totalorder %s239, 0
      %s242 = sadd.s32 %s241, 1
      %s243 = scalar_select %p240, %s241, %s242
      %p246 = pneg %p240
      %p247 = scmp.eq.s32.totalorder %s28, 1
      %p248 = por %p246, %p247
      %p249 = scmp.ne.s32.totalorder %s241, %s244
      %p250 = scmp.eq.s32.totalorder %s28, 0
      %p251 = por %p249, %p250
      %p252 = scmp.ne.s32.totalorder %s241, %s244
      %p253 = scmp.eq.s32.totalorder %s33, 1
      %p254 = por %p252, %p253
      %p255 = scmp.ne.s32.totalorder %s244, %s245
      %p256 = scmp.eq.s32.totalorder %s33, 0
      %p257 = por %p255, %p256
      %p258 = scmp.ne.s32.totalorder %s244, %s245
      %p259 = scmp.eq.s32.totalorder %s34, 1
      %p260 = por %p258, %p259
      %p262 = scmp.ne.s32.totalorder %s245, %s261
      %p263 = scmp.eq.s32.totalorder %s34, 0
      %p264 = por %p262, %p263
      %s265 = ssub.s32 %s28, %s35
      %p266 = scmp.eq.s32.totalorder %s265, 0
      %s268 = sadd.s32 %s267, 1
      %s269 = scalar_select %p266, %s267, %s268
      %p272 = pneg %p266
      %p273 = scmp.eq.s32.totalorder %s28, 1
      %p274 = por %p272, %p273
      %p275 = scmp.ne.s32.totalorder %s267, %s270
      %p276 = scmp.eq.s32.totalorder %s28, 0
      %p277 = por %p275, %p276
      %p278 = scmp.ne.s32.totalorder %s267, %s270
      %p279 = scmp.eq.s32.totalorder %s33, 1
      %p280 = por %p278, %p279
      %p281 = scmp.ne.s32.totalorder %s270, %s271
      %p282 = scmp.eq.s32.totalorder %s33, 0
      %p283 = por %p281, %p282
      %p284 = scmp.ne.s32.totalorder %s270, %s271
      %p285 = scmp.eq.s32.totalorder %s34, 1
      %p286 = por %p284, %p285
      %p288 = scmp.ne.s32.totalorder %s271, %s287
      %p289 = scmp.eq.s32.totalorder %s34, 0
      %p290 = por %p288, %p289
      %s291 = ssub.s32 %s28, %s35
      %p292 = scmp.eq.s32.totalorder %s291, 0
      %s294 = sadd.s32 %s293, 1
      %s295 = scalar_select %p292, %s293, %s294
      %p298 = pneg %p292
      %p299 = scmp.eq.s32.totalorder %s28, 1
      %p300 = por %p298, %p299
      %p301 = scmp.ne.s32.totalorder %s293, %s296
      %p302 = scmp.eq.s32.totalorder %s28, 0
      %p303 = por %p301, %p302
      %p304 = scmp.ne.s32.totalorder %s293, %s296
      %p305 = scmp.eq.s32.totalorder %s33, 1
      %p306 = por %p304, %p305
      %p307 = scmp.ne.s32.totalorder %s296, %s297
      %p308 = scmp.eq.s32.totalorder %s33, 0
      %p309 = por %p307, %p308
      %p310 = scmp.ne.s32.totalorder %s296, %s297
      %p311 = scmp.eq.s32.totalorder %s34, 1
      %p312 = por %p310, %p311
      %p314 = scmp.ne.s32.totalorder %s297, %s313
      %p315 = scmp.eq.s32.totalorder %s34, 0
      %p316 = por %p314, %p315
      %s317 = ssub.s32 %s28, %s35
      %p318 = scmp.eq.s32.totalorder %s317, 0
      %s320 = sadd.s32 %s319, 1
      %s321 = scalar_select %p318, %s319, %s320
      %p324 = pneg %p318
      %p325 = scmp.eq.s32.totalorder %s28, 1
      %p326 = por %p324, %p325
      %p327 = scmp.ne.s32.totalorder %s319, %s322
      %p328 = scmp.eq.s32.totalorder %s28, 0
      %p329 = por %p327, %p328
      %p330 = scmp.ne.s32.totalorder %s319, %s322
      %p331 = scmp.eq.s32.totalorder %s33, 1
      %p332 = por %p330, %p331
      %p333 = scmp.ne.s32.totalorder %s322, %s323
      %p334 = scmp.eq.s32.totalorder %s33, 0
      %p335 = por %p333, %p334
      %p336 = scmp.ne.s32.totalorder %s322, %s323
      %p337 = scmp.eq.s32.totalorder %s34, 1
      %p338 = por %p336, %p337
      %p340 = scmp.ne.s32.totalorder %s323, %s339
      %p341 = scmp.eq.s32.totalorder %s34, 0
      %p342 = por %p340, %p341
      %s343 = ssub.s32 %s28, %s35
      %p344 = scmp.eq.s32.totalorder %s343, 0
      %s346 = sadd.s32 %s345, 1
      %s347 = scalar_select %p344, %s345, %s346
      %p350 = pneg %p344
      %p351 = scmp.eq.s32.totalorder %s28, 1
      %p352 = por %p350, %p351
      %p353 = scmp.ne.s32.totalorder %s345, %s348
      %p354 = scmp.eq.s32.totalorder %s28, 0
      %p355 = por %p353, %p354
      %p356 = scmp.ne.s32.totalorder %s345, %s348
      %p357 = scmp.eq.s32.totalorder %s33, 1
      %p358 = por %p356, %p357
      %p359 = scmp.ne.s32.totalorder %s348, %s349
      %p360 = scmp.eq.s32.totalorder %s33, 0
      %p361 = por %p359, %p360
      %p362 = scmp.ne.s32.totalorder %s348, %s349
      %p363 = scmp.eq.s32.totalorder %s34, 1
      %p364 = por %p362, %p363
      %p366 = scmp.ne.s32.totalorder %s349, %s365
      %p367 = scmp.eq.s32.totalorder %s34, 0
      %p368 = por %p366, %p367
      %s369 = ssub.s32 %s28, %s35
      %p370 = scmp.eq.s32.totalorder %s369, 0
      %s372 = sadd.s32 %s371, 1
      %s373 = scalar_select %p370, %s371, %s372
      %p376 = pneg %p370
      %p377 = scmp.eq.s32.totalorder %s28, 1
      %p378 = por %p376, %p377
      %p379 = scmp.ne.s32.totalorder %s371, %s374
      %p380 = scmp.eq.s32.totalorder %s28, 0
      %p381 = por %p379, %p380
      %p382 = scmp.ne.s32.totalorder %s371, %s374
      %p383 = scmp.eq.s32.totalorder %s33, 1
      %p384 = por %p382, %p383
      %p385 = scmp.ne.s32.totalorder %s374, %s375
      %p386 = scmp.eq.s32.totalorder %s33, 0
      %p387 = por %p385, %p386
      %p388 = scmp.ne.s32.totalorder %s374, %s375
      %p389 = scmp.eq.s32.totalorder %s34, 1
      %p390 = por %p388, %p389
      %p392 = scmp.ne.s32.totalorder %s375, %s391
      %p393 = scmp.eq.s32.totalorder %s34, 0
      %p394 = por %p392, %p393
      %s395 = ssub.s32 %s28, %s35
      %p396 = scmp.eq.s32.totalorder %s395, 0
      %s398 = sadd.s32 %s397, 1
      %s399 = scalar_select %p396, %s397, %s398
      %p402 = pneg %p396
      %p403 = scmp.eq.s32.totalorder %s28, 1
      %p404 = por %p402, %p403
      %p405 = scmp.ne.s32.totalorder %s397, %s400
      %p406 = scmp.eq.s32.totalorder %s28, 0
      %p407 = por %p405, %p406
      %p408 = scmp.ne.s32.totalorder %s397, %s400
      %p409 = scmp.eq.s32.totalorder %s33, 1
      %p410 = por %p408, %p409
      %p411 = scmp.ne.s32.totalorder %s400, %s401
      %p412 = scmp.eq.s32.totalorder %s33, 0
      %p413 = por %p411, %p412
      %p414 = scmp.ne.s32.totalorder %s400, %s401
      %p415 = scmp.eq.s32.totalorder %s34, 1
      %p416 = por %p414, %p415
      %p418 = scmp.ne.s32.totalorder %s401, %s417
      %p419 = scmp.eq.s32.totalorder %s34, 0
      %p420 = por %p418, %p419
      %s421 = ssub.s32 %s28, %s35
      %p422 = scmp.eq.s32.totalorder %s421, 0
      %s424 = sadd.s32 %s423, 1
      %s425 = scalar_select %p422, %s423, %s424
      %p428 = pneg %p422
      %p429 = scmp.eq.s32.totalorder %s28, 1
      %p430 = por %p428, %p429
      %p431 = scmp.ne.s32.totalorder %s423, %s426
      %p432 = scmp.eq.s32.totalorder %s28, 0
      %p433 = por %p431, %p432
      %p434 = scmp.ne.s32.totalorder %s423, %s426
      %p435 = scmp.eq.s32.totalorder %s33, 1
      %p436 = por %p434, %p435
      %p437 = scmp.ne.s32.totalorder %s426, %s427
      %p438 = scmp.eq.s32.totalorder %s33, 0
      %p439 = por %p437, %p438
      %p440 = scmp.ne.s32.totalorder %s426, %s427
      %p441 = scmp.eq.s32.totalorder %s34, 1
      %p442 = por %p440, %p441
      %p444 = scmp.ne.s32.totalorder %s427, %s443
      %p445 = scmp.eq.s32.totalorder %s34, 0
      %p446 = por %p444, %p445
      %s447 = ssub.s32 %s28, %s35
      %p448 = scmp.eq.s32.totalorder %s447, 0
      %s450 = sadd.s32 %s449, 1
      %s451 = scalar_select %p448, %s449, %s450
      %p454 = pneg %p448
      %p455 = scmp.eq.s32.totalorder %s28, 1
      %p456 = por %p454, %p455
      %p457 = scmp.ne.s32.totalorder %s449, %s452
      %p458 = scmp.eq.s32.totalorder %s28, 0
      %p459 = por %p457, %p458
      %p460 = scmp.ne.s32.totalorder %s449, %s452
      %p461 = scmp.eq.s32.totalorder %s33, 1
      %p462 = por %p460, %p461
      %p463 = scmp.ne.s32.totalorder %s452, %s453
      %p464 = scmp.eq.s32.totalorder %s33, 0
      %p465 = por %p463, %p464
      %p466 = scmp.ne.s32.totalorder %s452, %s453
      %p467 = scmp.eq.s32.totalorder %s34, 1
      %p468 = por %p466, %p467
      %p470 = scmp.ne.s32.totalorder %s453, %s469
      %p471 = scmp.eq.s32.totalorder %s34, 0
      %p472 = por %p470, %p471
      %s474 = sadd.s32 %s473, 1
      %p477 = scmp.eq.s32.totalorder %s28, 1
      %p478 = scmp.ne.s32.totalorder %s473, %s475
      %p479 = scmp.eq.s32.totalorder %s28, 0
      %p480 = por %p478, %p479
      %p481 = scmp.ne.s32.totalorder %s473, %s475
      %p482 = scmp.eq.s32.totalorder %s33, 1
      %p483 = por %p481, %p482
      %p484 = scmp.ne.s32.totalorder %s475, %s476
      %p485 = scmp.eq.s32.totalorder %s33, 0
      %p486 = por %p484, %p485
      %p487 = scmp.ne.s32.totalorder %s475, %s476
      %p488 = scmp.eq.s32.totalorder %s34, 1
      %p489 = por %p487, %p488
      %p491 = scmp.ne.s32.totalorder %s476, %s490
      %p492 = scmp.eq.s32.totalorder %s34, 0
      %p493 = por %p491, %p492
      %p494 = scmp.le.s32.totalorder 1, %s28
      %p495 = scmp.lt.s32.totalorder %s28, 3
      %p496 = pnand %p494, %p495
      %p497 = pneg %p496
      // Predicated region
      $region9: #{tpu_custom_call.1} parent=5 // pred_check
        _
      $region10: #{tpu_custom_call.1} parent=5 // pred_check_branch
        %499 = sbr.rel (%p496) target = $region12
      $region11: #{tpu_custom_call.1} parent=5 // pred_region
        %s500 = ssub.s32 %s28, 1
        // Predicated region
        $region13: #{tpu_custom_call.1} parent=11 // pred_check
          %p501 = pneg %p49
        $region14: #{tpu_custom_call.1} parent=11 // pred_check_branch
          %503 = sbr.rel (%p501) target = $region16
        $region15: #{tpu_custom_call.1} parent=11 // pred_region
          %s505 = ssub.s32 256, 256
          %506 = vsyncadd [#allocation3], %s505
          %s507 = sshll.u32 [#allocation2], 4
          %s508 = int_to_ptr.vmem [resolvable:$true] %s507
          %513 = dma.hbm_to_vmem [thread:$0]  %s0, 256, %s508, [#allocation3], 128, 128, 8
        $region16: #{tpu_custom_call.1} parent=11 // pred_fallthru
          _
      $region12: #{tpu_custom_call.1} parent=5 // pred_fallthru
        _
      %p514 = scmp.lt.s32.totalorder %s28, 2
      // Predicated region
      $region17: #{tpu_custom_call.1} parent=5 // pred_check
        %p515 = pneg %p514
      $region18: #{tpu_custom_call.1} parent=5 // pred_check_branch
        %517 = sbr.rel (%p515) target = $region20
      $region19: #{tpu_custom_call.1} parent=5 // pred_region
        // Predicated region
        $region21: #{tpu_custom_call.1} parent=19 // pred_check
          %p518 = pneg %p69
        $region22: #{tpu_custom_call.1} parent=19 // pred_check_branch
          %520 = sbr.rel (%p518) target = $region24
        $region23: #{tpu_custom_call.1} parent=19 // pred_region
          %p521 = scmp.lt.s32.totalorder %s28, 1
          %s522 = scalar_select %p521, %s28, 1
          %s523 = smul.addr %s522, 4
          %s524 = smul.addr %s523, 8
          %s525 = scalar_lea.vmem %s1, %s524
        $region24: #{tpu_custom_call.1} parent=19 // pred_fallthru
          _
        // Predicated region
        $region25: #{tpu_custom_call.1} parent=19 // pred_check
          %p526 = pneg %p95
        $region26: #{tpu_custom_call.1} parent=19 // pred_check_branch
          %528 = sbr.rel (%p526) target = $region28
        $region27: #{tpu_custom_call.1} parent=19 // pred_region
          %p529 = scmp.lt.s32.totalorder %s28, 1
          %s530 = scalar_select %p529, %s28, 1
          %s531 = scalar_lea.vmem %s2, %s530
        $region28: #{tpu_custom_call.1} parent=19 // pred_fallthru
          _
        // Predicated region
        $region29: #{tpu_custom_call.1} parent=19 // pred_check
          %p532 = pneg %p121
        $region30: #{tpu_custom_call.1} parent=19 // pred_check_branch
          %534 = sbr.rel (%p532) target = $region32
        $region31: #{tpu_custom_call.1} parent=19 // pred_region
          %p535 = scmp.lt.s32.totalorder %s28, 1
          %s536 = scalar_select %p535, %s28, 1
          %s537 = smul.addr %s536, 4
          %s538 = smul.addr %s537, 8
          %s539 = scalar_lea.vmem %s3, %s538
        $region32: #{tpu_custom_call.1} parent=19 // pred_fallthru
          _
        // Predicated region
        $region33: #{tpu_custom_call.1} parent=19 // pred_check
          %p540 = pneg %p147
        $region34: #{tpu_custom_call.1} parent=19 // pred_check_branch
          %542 = sbr.rel (%p540) target = $region36
        $region35: #{tpu_custom_call.1} parent=19 // pred_region
          %p543 = scmp.lt.s32.totalorder %s28, 1
          %s544 = scalar_select %p543, %s28, 1
          %s545 = scalar_lea.vmem %s4, %s544
        $region36: #{tpu_custom_call.1} parent=19 // pred_fallthru
          _
        // Predicated region
        $region37: #{tpu_custom_call.1} parent=19 // pred_check
          %p546 = pneg %p173
        $region38: #{tpu_custom_call.1} parent=19 // pred_check_branch
          %548 = sbr.rel (%p546) target = $region40
        $region39: #{tpu_custom_call.1} parent=19 // pred_region
          %p549 = scmp.lt.s32.totalorder %s28, 1
          %s550 = scalar_select %p549, %s28, 1
          %s551 = smul.addr %s550, 4
          %s552 = smul.addr %s551, 8
          %s553 = scalar_lea.vmem %s5, %s552
        $region40: #{tpu_custom_call.1} parent=19 // pred_fallthru
          _
        // Predicated region
        $region41: #{tpu_custom_call.1} parent=19 // pred_check
          %p554 = pneg %p199
        $region42: #{tpu_custom_call.1} parent=19 // pred_check_branch
          %556 = sbr.rel (%p554) target = $region44
        $region43: #{tpu_custom_call.1} parent=19 // pred_region
          %p557 = scmp.lt.s32.totalorder %s28, 1
          %s558 = scalar_select %p557, %s28, 1
          %s559 = scalar_lea.vmem %s6, %s558
        $region44: #{tpu_custom_call.1} parent=19 // pred_fallthru
          _
        // Predicated region
        $region45: #{tpu_custom_call.1} parent=19 // pred_check
          %p560 = pneg %p225
        $region46: #{tpu_custom_call.1} parent=19 // pred_check_branch
          %562 = sbr.rel (%p560) target = $region48
        $region47: #{tpu_custom_call.1} parent=19 // pred_region
          %s563 = sand.u32 %s28, 1
          %s564 = scalar_lea.sflag [#allocation6], %s563
          %s565 = sand.u32 %s215, 1
          %s566 = smul.addr %s565, 32
          %s567 = scalar_lea.vmem [#allocation5], %s566
          %s569 = ssub.s32 512, 512
          %570 = vsyncadd %s564, %s569
          %s571 = smul.addr %s28, 4
          %s572 = smul.addr %s571, 128
          %s573 = scalar_lea.hbm %s7, %s572
          %s574 = sshll.u32 %s567, 4
          %s575 = int_to_ptr.vmem [resolvable:$true] %s574
          %580 = dma.hbm_to_vmem [thread:$0]  %s573, 512, %s575, %s564, 128, 128, 8
        $region48: #{tpu_custom_call.1} parent=19 // pred_fallthru
          _
        // Predicated region
        $region49: #{tpu_custom_call.1} parent=19 // pred_check
          %p581 = pneg %p251
        $region50: #{tpu_custom_call.1} parent=19 // pred_check_branch
          %583 = sbr.rel (%p581) target = $region52
        $region51: #{tpu_custom_call.1} parent=19 // pred_region
          %p584 = scmp.lt.s32.totalorder %s28, 1
          %s585 = scalar_select %p584, %s28, 1
          %s586 = scalar_lea.vmem %s8, %s585
        $region52: #{tpu_custom_call.1} parent=19 // pred_fallthru
          _
        // Predicated region
        $region53: #{tpu_custom_call.1} parent=19 // pred_check
          %p587 = pneg %p277
        $region54: #{tpu_custom_call.1} parent=19 // pred_check_branch
          %589 = sbr.rel (%p587) target = $region56
        $region55: #{tpu_custom_call.1} parent=19 // pred_region
          %p590 = scmp.lt.s32.totalorder %s28, 1
          %s591 = scalar_select %p590, %s28, 1
          %s592 = scalar_lea.vmem %s9, %s591
        $region56: #{tpu_custom_call.1} parent=19 // pred_fallthru
          _
        // Predicated region
        $region57: #{tpu_custom_call.1} parent=19 // pred_check
          %p593 = pneg %p303
        $region58: #{tpu_custom_call.1} parent=19 // pred_check_branch
          %595 = sbr.rel (%p593) target = $region60
        $region59: #{tpu_custom_call.1} parent=19 // pred_region
          %p596 = scmp.lt.s32.totalorder %s28, 1
          %s597 = scalar_select %p596, %s28, 1
          %s598 = scalar_lea.vmem %s10, %s597
        $region60: #{tpu_custom_call.1} parent=19 // pred_fallthru
          _
        // Predicated region
        $region61: #{tpu_custom_call.1} parent=19 // pred_check
          %p599 = pneg %p329
        $region62: #{tpu_custom_call.1} parent=19 // pred_check_branch
          %601 = sbr.rel (%p599) target = $region64
        $region63: #{tpu_custom_call.1} parent=19 // pred_region
          %s602 = sand.u32 %s28, 1
          %s603 = scalar_lea.sflag [#allocation6], %s602
          %s604 = sand.u32 %s319, 1
          %s605 = smul.addr %s604, 32
          %s606 = scalar_lea.vmem [#allocation7], %s605
          %s608 = ssub.s32 512, 512
          %609 = vsyncadd %s603, %s608
          %s610 = smul.addr %s28, 4
          %s611 = smul.addr %s610, 128
          %s612 = scalar_lea.hbm %s11, %s611
          %s613 = sshll.u32 %s606, 4
          %s614 = int_to_ptr.vmem [resolvable:$true] %s613
          %619 = dma.hbm_to_vmem [thread:$0]  %s612, 512, %s614, %s603, 128, 128, 8
        $region64: #{tpu_custom_call.1} parent=19 // pred_fallthru
          _
        // Predicated region
        $region65: #{tpu_custom_call.1} parent=19 // pred_check
          %p620 = pneg %p355
        $region66: #{tpu_custom_call.1} parent=19 // pred_check_branch
          %622 = sbr.rel (%p620) target = $region68
        $region67: #{tpu_custom_call.1} parent=19 // pred_region
          %p623 = scmp.lt.s32.totalorder %s28, 1
          %s624 = scalar_select %p623, %s28, 1
          %s625 = scalar_lea.vmem %s12, %s624
        $region68: #{tpu_custom_call.1} parent=19 // pred_fallthru
          _
        // Predicated region
        $region69: #{tpu_custom_call.1} parent=19 // pred_check
          %p626 = pneg %p381
        $region70: #{tpu_custom_call.1} parent=19 // pred_check_branch
          %628 = sbr.rel (%p626) target = $region72
        $region71: #{tpu_custom_call.1} parent=19 // pred_region
          %p629 = scmp.lt.s32.totalorder %s28, 1
          %s630 = scalar_select %p629, %s28, 1
          %s631 = smul.addr %s630, 8
          %s632 = smul.addr %s631, 8
          %s633 = scalar_lea.vmem %s13, %s632
        $region72: #{tpu_custom_call.1} parent=19 // pred_fallthru
          _
        // Predicated region
        $region73: #{tpu_custom_call.1} parent=19 // pred_check
          %p634 = pneg %p407
        $region74: #{tpu_custom_call.1} parent=19 // pred_check_branch
          %636 = sbr.rel (%p634) target = $region76
        $region75: #{tpu_custom_call.1} parent=19 // pred_region
          %p637 = scmp.lt.s32.totalorder %s28, 1
          %s638 = scalar_select %p637, %s28, 1
          %s639 = scalar_lea.vmem %s14, %s638
        $region76: #{tpu_custom_call.1} parent=19 // pred_fallthru
          _
        // Predicated region
        $region77: #{tpu_custom_call.1} parent=19 // pred_check
          %p640 = pneg %p433
        $region78: #{tpu_custom_call.1} parent=19 // pred_check_branch
          %642 = sbr.rel (%p640) target = $region80
        $region79: #{tpu_custom_call.1} parent=19 // pred_region
          %p643 = scmp.lt.s32.totalorder %s28, 1
          %s644 = scalar_select %p643, %s28, 1
          %s645 = scalar_lea.vmem %s15, %s644
        $region80: #{tpu_custom_call.1} parent=19 // pred_fallthru
          _
        // Predicated region
        $region81: #{tpu_custom_call.1} parent=19 // pred_check
          %p646 = pneg %p459
        $region82: #{tpu_custom_call.1} parent=19 // pred_check_branch
          %648 = sbr.rel (%p646) target = $region84
        $region83: #{tpu_custom_call.1} parent=19 // pred_region
          %p649 = scmp.lt.s32.totalorder %s28, 1
          %s650 = scalar_select %p649, %s28, 1
          %s651 = scalar_lea.vmem %s16, %s650
        $region84: #{tpu_custom_call.1} parent=19 // pred_fallthru
          _
      $region20: #{tpu_custom_call.1} parent=5 // pred_fallthru
        _
      %p652 = scmp.le.s32.totalorder 1, %s28
      %p653 = scmp.lt.s32.totalorder %s28, 3
      %p654 = pnand %p652, %p653
      %p655 = pneg %p654
      // Predicated region
      $region85: #{tpu_custom_call.1} parent=5 // pred_check
        _
      $region86: #{tpu_custom_call.1} parent=5 // pred_check_branch
        %657 = sbr.rel (%p654) target = $region88
      $region87: #{tpu_custom_call.1} parent=5 // pred_region
        %s658 = ssub.s32 %s28, 1
        // Predicated region
        $region89: #{tpu_custom_call.1} parent=87 // pred_check
          %p659 = pneg %p49
        $region90: #{tpu_custom_call.1} parent=87 // pred_check_branch
          %661 = sbr.rel (%p659) target = $region92
        $region91: #{tpu_custom_call.1} parent=87 // pred_region
          %662 = dma.done [#allocation3], 256
        $region92: #{tpu_custom_call.1} parent=87 // pred_fallthru
          _
        %s663 = sand.u32 %s33, 1
        %s664 = scalar_lea.sflag [#allocation6], %s663
        %s665 = sand.u32 %s218, 1
        %s666 = smul.addr %s665, 32
        %s667 = scalar_lea.vmem [#allocation5], %s666
        // Predicated region
        $region93: #{tpu_custom_call.1} parent=87 // pred_check
          %p668 = pneg %p231
        $region94: #{tpu_custom_call.1} parent=87 // pred_check_branch
          %670 = sbr.rel (%p668) target = $region96
        $region95: #{tpu_custom_call.1} parent=87 // pred_region
          %671 = dma.done %s664, 512
        $region96: #{tpu_custom_call.1} parent=87 // pred_fallthru
          _
        %s672 = sand.u32 %s33, 1
        %s673 = scalar_lea.sflag [#allocation6], %s672
        %s674 = sand.u32 %s322, 1
        %s675 = smul.addr %s674, 32
        %s676 = scalar_lea.vmem [#allocation7], %s675
        // Predicated region
        $region97: #{tpu_custom_call.1} parent=87 // pred_check
          %p677 = pneg %p335
        $region98: #{tpu_custom_call.1} parent=87 // pred_check_branch
          %679 = sbr.rel (%p677) target = $region100
        $region99: #{tpu_custom_call.1} parent=87 // pred_region
          %680 = dma.done %s673, 512
        $region100: #{tpu_custom_call.1} parent=87 // pred_fallthru
          _
        %p681 = pneg %p49
        %p682 = pneg %p46
        %p683 = scmp.lt.s32.totalorder %s33, 1
        %s684 = scalar_select %p683, %s33, 1
        %s685 = smul.addr %s684, 4
        %s686 = smul.addr %s685, 8
        %s687 = scalar_lea.vmem %s1, %s686
        %p688 = pneg %p75
        %p689 = pneg %p72
        %p690 = scmp.lt.s32.totalorder %s33, 1
        %s691 = scalar_select %p690, %s33, 1
        %s692 = scalar_lea.vmem %s2, %s691
        %p693 = pneg %p101
        %p694 = pneg %p98
        %p695 = scmp.lt.s32.totalorder %s33, 1
        %s696 = scalar_select %p695, %s33, 1
        %s697 = smul.addr %s696, 4
        %s698 = smul.addr %s697, 8
        %s699 = scalar_lea.vmem %s3, %s698
        %p700 = pneg %p127
        %p701 = pneg %p124
        %p702 = scmp.lt.s32.totalorder %s33, 1
        %s703 = scalar_select %p702, %s33, 1
        %s704 = scalar_lea.vmem %s4, %s703
        %p705 = pneg %p153
        %p706 = pneg %p150
        %p707 = scmp.lt.s32.totalorder %s33, 1
        %s708 = scalar_select %p707, %s33, 1
        %s709 = smul.addr %s708, 4
        %s710 = smul.addr %s709, 8
        %s711 = scalar_lea.vmem %s5, %s710
        %p712 = pneg %p179
        %p713 = pneg %p176
        %p714 = scmp.lt.s32.totalorder %s33, 1
        %s715 = scalar_select %p714, %s33, 1
        %s716 = scalar_lea.vmem %s6, %s715
        %p717 = pneg %p205
        %p718 = pneg %p202
        %s719 = sand.u32 %s33, 1
        %s720 = scalar_lea.sflag [#allocation6], %s719
        %s721 = sand.u32 %s218, 1
        %s722 = smul.addr %s721, 32
        %s723 = scalar_lea.vmem [#allocation5], %s722
        %p724 = pneg %p231
        %p725 = pneg %p228
        %p726 = scmp.lt.s32.totalorder %s33, 1
        %s727 = scalar_select %p726, %s33, 1
        %s728 = scalar_lea.vmem %s8, %s727
        %p729 = pneg %p257
        %p730 = pneg %p254
        %p731 = scmp.lt.s32.totalorder %s33, 1
        %s732 = scalar_select %p731, %s33, 1
        %s733 = scalar_lea.vmem %s9, %s732
        %p734 = pneg %p283
        %p735 = pneg %p280
        %p736 = scmp.lt.s32.totalorder %s33, 1
        %s737 = scalar_select %p736, %s33, 1
        %s738 = scalar_lea.vmem %s10, %s737
        %p739 = pneg %p309
        %p740 = pneg %p306
        %s741 = sand.u32 %s33, 1
        %s742 = scalar_lea.sflag [#allocation6], %s741
        %s743 = sand.u32 %s322, 1
        %s744 = smul.addr %s743, 32
        %s745 = scalar_lea.vmem [#allocation7], %s744
        %p746 = pneg %p335
        %p747 = pneg %p332
        %p748 = scmp.lt.s32.totalorder %s33, 1
        %s749 = scalar_select %p748, %s33, 1
        %s750 = scalar_lea.vmem %s12, %s749
        %p751 = pneg %p361
        %p752 = pneg %p358
        %p753 = scmp.lt.s32.totalorder %s33, 1
        %s754 = scalar_select %p753, %s33, 1
        %s755 = smul.addr %s754, 8
        %s756 = smul.addr %s755, 8
        %s757 = scalar_lea.vmem %s13, %s756
        %p758 = pneg %p387
        %p759 = pneg %p384
        %p760 = scmp.lt.s32.totalorder %s33, 1
        %s761 = scalar_select %p760, %s33, 1
        %s762 = scalar_lea.vmem %s14, %s761
        %p763 = pneg %p413
        %p764 = pneg %p410
        %p765 = scmp.lt.s32.totalorder %s33, 1
        %s766 = scalar_select %p765, %s33, 1
        %s767 = scalar_lea.vmem %s15, %s766
        %p768 = pneg %p439
        %p769 = pneg %p436
        %p770 = scmp.lt.s32.totalorder %s33, 1
        %s771 = scalar_select %p770, %s33, 1
        %s772 = scalar_lea.vmem %s16, %s771
        %p773 = pneg %p465
        %p774 = pneg %p462
        %p775 = pneg %p486
        %p776 = pneg %p483
        %p777 = scmp.lt.s32.totalorder %s33, 1
        %s778 = scalar_select %p777, %s33, 1
        %s779 = smul.addr %s778, 4
        %s780 = smul.addr %s779, 8
        %s781 = scalar_lea.vmem %s1, %s780
        %p782 = scmp.lt.s32.totalorder %s33, 1
        %s783 = scalar_select %p782, %s33, 1
        %s784 = scalar_lea.vmem %s2, %s783
        %p785 = scmp.lt.s32.totalorder %s33, 1
        %s786 = scalar_select %p785, %s33, 1
        %s787 = smul.addr %s786, 4
        %s788 = smul.addr %s787, 8
        %s789 = scalar_lea.vmem %s3, %s788
        %p790 = scmp.lt.s32.totalorder %s33, 1
        %s791 = scalar_select %p790, %s33, 1
        %s792 = scalar_lea.vmem %s4, %s791
        %p793 = scmp.lt.s32.totalorder %s33, 1
        %s794 = scalar_select %p793, %s33, 1
        %s795 = smul.addr %s794, 4
        %s796 = smul.addr %s795, 8
        %s797 = scalar_lea.vmem %s5, %s796
        %p798 = scmp.lt.s32.totalorder %s33, 1
        %s799 = scalar_select %p798, %s33, 1
        %s800 = scalar_lea.vmem %s6, %s799
        %p801 = scmp.lt.s32.totalorder %s33, 1
        %s802 = scalar_select %p801, %s33, 1
        %s803 = scalar_lea.vmem %s8, %s802
        %p804 = scmp.lt.s32.totalorder %s33, 1
        %s805 = scalar_select %p804, %s33, 1
        %s806 = scalar_lea.vmem %s9, %s805
        %p807 = scmp.lt.s32.totalorder %s33, 1
        %s808 = scalar_select %p807, %s33, 1
        %s809 = scalar_lea.vmem %s10, %s808
        %p810 = scmp.lt.s32.totalorder %s33, 1
        %s811 = scalar_select %p810, %s33, 1
        %s812 = scalar_lea.vmem %s12, %s811
        %p813 = scmp.lt.s32.totalorder %s33, 1
        %s814 = scalar_select %p813, %s33, 1
        %s815 = smul.addr %s814, 8
        %s816 = smul.addr %s815, 8
        %s817 = scalar_lea.vmem %s13, %s816
        %p818 = scmp.lt.s32.totalorder %s33, 1
        %s819 = scalar_select %p818, %s33, 1
        %s820 = scalar_lea.vmem %s14, %s819
        %p821 = scmp.lt.s32.totalorder %s33, 1
        %s822 = scalar_select %p821, %s33, 1
        %s823 = scalar_lea.vmem %s15, %s822
        %p824 = scmp.lt.s32.totalorder %s33, 1
        %s825 = scalar_select %p824, %s33, 1
        %s826 = scalar_lea.vmem %s16, %s825
        %p828 = scmp.eq.s32.totalorder %s33, 0
        // Predicated region
        $region101: #{tpu_custom_call.1} parent=87 // pred_check
          %p829 = pneg %p828
        $region102: #{tpu_custom_call.1} parent=87 // pred_check_branch
          %831 = sbr.rel (%p829) target = $region104
        $region103: #{tpu_custom_call.1} parent=87 // pred_region
          %v832 = vld [vmem:[#allocation2] sm:$0xff]
          %v833 = vld [vmem:[#allocation2 + $0x8] sm:$0xff]
          %vm834 = vcmask 261120
          %835 = vst.msk [vmem:[#allocation8] sm:$0xff] %vm834, %v832
          %836 = vst.msk [vmem:[#allocation8 + $0x8] sm:$0xff] %vm834, %v833
        $region104: #{tpu_custom_call.1} parent=87 // pred_fallthru
          _
        %v837 = vld [vmem:[#allocation8] sm:$0xff]
        %v838 = vld [vmem:[#allocation8 + $0x8] sm:$0xff]
        %v839 = vpack.c.bf16 %v838, %v837
        %v840 = vld [vmem:[%s781] sm:$0xff]
        %v841 = vld [vmem:[%s781 + $0x8] sm:$0xff]
        %v842 = vld [vmem:[%s781 + $0x10] sm:$0xff]
        %v843 = vld [vmem:[%s781 + $0x18] sm:$0xff]
        %v844 = vpack.c.bf16 %v841, %v840
        %v845 = vpack.c.bf16 %v843, %v842
        %v846 = vld [vmem:[%s784] sm:$0x1]
        %v848 = vlaneseq
        %v849 = vshrl.u32 %v848, 7
        %v850 = vsub.s32 0, %v849
        %v851 = vrot.slane %v846, %v850
        %vm853 = vcmask 261120
        %v855 = vsel %vm853, %v839, 0
        %857 = vmatprep.subr.bf16.mxu0 0
        %858 = vmatpush1.bf16.msra.mxu0 %v844
        %859 = vmatprep.subr.bf16.mxu0 0
        %860 = vmatpush1.bf16.msra.mxu0 %v845
        %861 = vmatprep.subr.bf16.mxu0 0
        %862 = vmatpush1.bf16.msra.mxu0 0
        %863 = vmatprep.subr.bf16.mxu0 0
        %864 = vmatpush1.bf16.msra.mxu0 0
        %865 = vmatprep.subr.bf16.mxu0 0
        %866 = vmatpush1.bf16.msra.mxu0 0
        %867 = vmatprep.subr.bf16.mxu0 0
        %868 = vmatpush1.bf16.msra.mxu0 0
        %869 = vmatprep.subr.bf16.mxu0 0
        %870 = vmatpush1.bf16.msra.mxu0 0
        %871 = vmatprep.subr.bf16.mxu0 0
        %872 = vmatpush1.bf16.msra.mxu0 0
        %873 = vmatprep.subr.bf16.mxu0 0
        %874 = vmatpush1.bf16.msra.mxu0 0
        %875 = vmatprep.subr.bf16.mxu0 0
        %876 = vmatpush1.bf16.msra.mxu0 0
        %877 = vmatprep.subr.bf16.mxu0 0
        %878 = vmatpush1.bf16.msra.mxu0 0
        %879 = vmatprep.subr.bf16.mxu0 0
        %880 = vmatpush1.bf16.msra.mxu0 0
        %881 = vmatprep.subr.bf16.mxu0 0
        %882 = vmatpush1.bf16.msra.mxu0 0
        %883 = vmatprep.subr.bf16.mxu0 0
        %884 = vmatpush1.bf16.msra.mxu0 0
        %885 = vmatprep.subr.bf16.mxu0 0
        %886 = vmatpush1.bf16.msra.mxu0 0
        %887 = vmatprep.subr.bf16.mxu0 0
        %888 = vmatpush1.bf16.msra.mxu0 0
        %889 = vmatprep.mubr.bf16.mxu0 0
        %890 = vmatmul.mubr.bf16.gmra.mrb[0].mxu0 %v855
        %v891 = vpop.f32.mrb[0].mxu0
        %v892 = vadd.f32 %v851, %v891
        %v893 = vpop.f32.mrb[0].mxu0
        %v894 = vpop.f32.mrb[0].mxu0
        %v895 = vadd.f32 %v851, %v894
        %v896 = vpop.f32.mrb[0].mxu0
        %897 = vdwg.mxu0
        %v898 = vld [vmem:[%s789] sm:$0xff]
        %v899 = vld [vmem:[%s789 + $0x8] sm:$0xff]
        %v900 = vld [vmem:[%s789 + $0x10] sm:$0xff]
        %v901 = vld [vmem:[%s789 + $0x18] sm:$0xff]
        %v902 = vpack.c.bf16 %v899, %v898
        %v903 = vpack.c.bf16 %v901, %v900
        %v904 = vld [vmem:[%s792] sm:$0x1]
        %v906 = vlaneseq
        %v907 = vshrl.u32 %v906, 7
        %v908 = vsub.s32 0, %v907
        %v909 = vrot.slane %v904, %v908
        %911 = vmatprep.subr.bf16.mxu0 0
        %912 = vmatpush1.bf16.msra.mxu0 %v902
        %913 = vmatprep.subr.bf16.mxu0 0
        %914 = vmatpush1.bf16.msra.mxu0 %v903
        %915 = vmatprep.subr.bf16.mxu0 0
        %916 = vmatpush1.bf16.msra.mxu0 0
        %917 = vmatprep.subr.bf16.mxu0 0
        %918 = vmatpush1.bf16.msra.mxu0 0
        %919 = vmatprep.subr.bf16.mxu0 0
        %920 = vmatpush1.bf16.msra.mxu0 0
        %921 = vmatprep.subr.bf16.mxu0 0
        %922 = vmatpush1.bf16.msra.mxu0 0
        %923 = vmatprep.subr.bf16.mxu0 0
        %924 = vmatpush1.bf16.msra.mxu0 0
        %925 = vmatprep.subr.bf16.mxu0 0
        %926 = vmatpush1.bf16.msra.mxu0 0
        %927 = vmatprep.subr.bf16.mxu0 0
        %928 = vmatpush1.bf16.msra.mxu0 0
        %929 = vmatprep.subr.bf16.mxu0 0
        %930 = vmatpush1.bf16.msra.mxu0 0
        %931 = vmatprep.subr.bf16.mxu0 0
        %932 = vmatpush1.bf16.msra.mxu0 0
        %933 = vmatprep.subr.bf16.mxu0 0
        %934 = vmatpush1.bf16.msra.mxu0 0
        %935 = vmatprep.subr.bf16.mxu0 0
        %936 = vmatpush1.bf16.msra.mxu0 0
        %937 = vmatprep.subr.bf16.mxu0 0
        %938 = vmatpush1.bf16.msra.mxu0 0
        %939 = vmatprep.subr.bf16.mxu0 0
        %940 = vmatpush1.bf16.msra.mxu0 0
        %941 = vmatprep.subr.bf16.mxu0 0
        %942 = vmatpush1.bf16.msra.mxu0 0
        %943 = vmatprep.mubr.bf16.mxu0 0
        %944 = vmatmul.mubr.bf16.gmra.mrb[0].mxu0 %v855
        %v945 = vpop.f32.mrb[0].mxu0
        %v946 = vadd.f32 %v909, %v945
        %v947 = vpop.f32.mrb[0].mxu0
        %v948 = vpop.f32.mrb[0].mxu0
        %v949 = vadd.f32 %v909, %v948
        %v950 = vpop.f32.mrb[0].mxu0
        %951 = vdwg.mxu0
        %v952 = vld [vmem:[%s797] sm:$0xff]
        %v953 = vld [vmem:[%s797 + $0x8] sm:$0xff]
        %v954 = vld [vmem:[%s797 + $0x10] sm:$0xff]
        %v955 = vld [vmem:[%s797 + $0x18] sm:$0xff]
        %v956 = vpack.c.bf16 %v953, %v952
        %v957 = vpack.c.bf16 %v955, %v954
        %v958 = vld [vmem:[%s800] sm:$0x1]
        %v960 = vlaneseq
        %v961 = vshrl.u32 %v960, 7
        %v962 = vsub.s32 0, %v961
        %v963 = vrot.slane %v958, %v962
        %965 = vmatprep.subr.bf16.mxu0 0
        %966 = vmatpush1.bf16.msra.mxu0 %v956
        %967 = vmatprep.subr.bf16.mxu0 0
        %968 = vmatpush1.bf16.msra.mxu0 %v957
        %969 = vmatprep.subr.bf16.mxu0 0
        %970 = vmatpush1.bf16.msra.mxu0 0
        %971 = vmatprep.subr.bf16.mxu0 0
        %972 = vmatpush1.bf16.msra.mxu0 0
        %973 = vmatprep.subr.bf16.mxu0 0
        %974 = vmatpush1.bf16.msra.mxu0 0
        %975 = vmatprep.subr.bf16.mxu0 0
        %976 = vmatpush1.bf16.msra.mxu0 0
        %977 = vmatprep.subr.bf16.mxu0 0
        %978 = vmatpush1.bf16.msra.mxu0 0
        %979 = vmatprep.subr.bf16.mxu0 0
        %980 = vmatpush1.bf16.msra.mxu0 0
        %981 = vmatprep.subr.bf16.mxu0 0
        %982 = vmatpush1.bf16.msra.mxu0 0
        %983 = vmatprep.subr.bf16.mxu0 0
        %984 = vmatpush1.bf16.msra.mxu0 0
        %985 = vmatprep.subr.bf16.mxu0 0
        %986 = vmatpush1.bf16.msra.mxu0 0
        %987 = vmatprep.subr.bf16.mxu0 0
        %988 = vmatpush1.bf16.msra.mxu0 0
        %989 = vmatprep.subr.bf16.mxu0 0
        %990 = vmatpush1.bf16.msra.mxu0 0
        %991 = vmatprep.subr.bf16.mxu0 0
        %992 = vmatpush1.bf16.msra.mxu0 0
        %993 = vmatprep.subr.bf16.mxu0 0
        %994 = vmatpush1.bf16.msra.mxu0 0
        %995 = vmatprep.subr.bf16.mxu0 0
        %996 = vmatpush1.bf16.msra.mxu0 0
        %997 = vmatprep.mubr.bf16.mxu0 0
        %998 = vmatmul.mubr.bf16.gmra.mrb[0].mxu0 %v855
        %v999 = vpop.f32.mrb[0].mxu0
        %v1000 = vadd.f32 %v963, %v999
        %v1001 = vpop.f32.mrb[0].mxu0
        %v1002 = vpop.f32.mrb[0].mxu0
        %v1003 = vadd.f32 %v963, %v1002
        %v1004 = vpop.f32.mrb[0].mxu0
        %1005 = vdwg.mxu0
        %v1006 = vpack.c.bf16 %v892, %v892
        %v1007 = vpack.c.bf16 %v895, %v895
        %v1008 = vpack.c.bf16 %v946, %v946
        %v1009 = vpack.c.bf16 %v949, %v949
        %v1010 = vpack.c.bf16 %v1000, %v1000
        %v1011 = vpack.c.bf16 %v1003, %v1003
        %v1012 = vld [vmem:[%s667] sm:$0xff]
        %v1013 = vld [vmem:[%s667 + $0x8] sm:$0xff]
        %v1014 = vld [vmem:[%s667 + $0x10] sm:$0xff]
        %v1015 = vld [vmem:[%s667 + $0x18] sm:$0xff]
        %v1016 = vpack.c.bf16 %v1013, %v1012
        %v1017 = vpack.c.bf16 %v1015, %v1014
        %vm1018 = vcmask 64512
        %v1020 = vsel %vm1018, %v1006, 0
        %v1023 = vsel %vm1018, %v1008, 0
        %1025 = vmatprep.subr.bf16.mxu0 0
        %1026 = vmatpush1.bf16.xpose.msra.mxu0 %v1023
        %1027 = vmatprep.subr.bf16.mxu0 0
        %1028 = vmatpush1.bf16.xpose.msra.mxu0 0
        %1029 = vmatprep.subr.bf16.mxu0 0
        %1030 = vmatpush1.bf16.xpose.msra.mxu0 0
        %1031 = vmatprep.subr.bf16.mxu0 0
        %1032 = vmatpush1.bf16.xpose.msra.mxu0 0
        %1033 = vmatprep.subr.bf16.mxu0 0
        %1034 = vmatpush1.bf16.xpose.msra.mxu0 0
        %1035 = vmatprep.subr.bf16.mxu0 0
        %1036 = vmatpush1.bf16.xpose.msra.mxu0 0
        %1037 = vmatprep.subr.bf16.mxu0 0
        %1038 = vmatpush1.bf16.xpose.msra.mxu0 0
        %1039 = vmatprep.subr.bf16.mxu0 0
        %1040 = vmatpush1.bf16.xpose.msra.mxu0 0
        %1041 = vmatprep.subr.bf16.mxu0 0
        %1042 = vmatpush1.bf16.xpose.msra.mxu0 0
        %1043 = vmatprep.subr.bf16.mxu0 0
        %1044 = vmatpush1.bf16.xpose.msra.mxu0 0
        %1045 = vmatprep.subr.bf16.mxu0 0
        %1046 = vmatpush1.bf16.xpose.msra.mxu0 0
        %1047 = vmatprep.subr.bf16.mxu0 0
        %1048 = vmatpush1.bf16.xpose.msra.mxu0 0
        %1049 = vmatprep.subr.bf16.mxu0 0
        %1050 = vmatpush1.bf16.xpose.msra.mxu0 0
        %1051 = vmatprep.subr.bf16.mxu0 0
        %1052 = vmatpush1.bf16.xpose.msra.mxu0 0
        %1053 = vmatprep.subr.bf16.mxu0 0
        %1054 = vmatpush1.bf16.xpose.msra.mxu0 0
        %1055 = vmatprep.subr.bf16.mxu0 0
        %1056 = vmatpush1.bf16.xpose.msra.mxu0 0
        %1057 = vmatprep.mubr.bf16.mxu0 0
        %1058 = vmatmul.mubr.bf16.gmra.mrb[0].mxu0 %v1020
        %v1059 = vpop.f32.mrb[0].mxu0
        %v1060 = vadd.f32 0.0, %v1059
        %v1061 = vpop.f32.mrb[0].mxu0
        %v1062 = vpop.f32.mrb[0].mxu0
        %v1063 = vpop.f32.mrb[0].mxu0
        %1064 = vdwg.mxu0
        %v1066 = vsel %vm1018, %v1007, 0
        %v1069 = vsel %vm1018, %v1009, 0
        %1071 = vmatprep.subr.bf16.mxu0 0
        %1072 = vmatpush1.bf16.xpose.msra.mxu0 %v1069
        %1073 = vmatprep.subr.bf16.mxu0 0
        %1074 = vmatpush1.bf16.xpose.msra.mxu0 0
        %1075 = vmatprep.subr.bf16.mxu0 0
        %1076 = vmatpush1.bf16.xpose.msra.mxu0 0
        %1077 = vmatprep.subr.bf16.mxu0 0
        %1078 = vmatpush1.bf16.xpose.msra.mxu0 0
        %1079 = vmatprep.subr.bf16.mxu0 0
        %1080 = vmatpush1.bf16.xpose.msra.mxu0 0
        %1081 = vmatprep.subr.bf16.mxu0 0
        %1082 = vmatpush1.bf16.xpose.msra.mxu0 0
        %1083 = vmatprep.subr.bf16.mxu0 0
        %1084 = vmatpush1.bf16.xpose.msra.mxu0 0
        %1085 = vmatprep.subr.bf16.mxu0 0
        %1086 = vmatpush1.bf16.xpose.msra.mxu0 0
        %1087 = vmatprep.subr.bf16.mxu0 0
        %1088 = vmatpush1.bf16.xpose.msra.mxu0 0
        %1089 = vmatprep.subr.bf16.mxu0 0
        %1090 = vmatpush1.bf16.xpose.msra.mxu0 0
        %1091 = vmatprep.subr.bf16.mxu0 0
        %1092 = vmatpush1.bf16.xpose.msra.mxu0 0
        %1093 = vmatprep.subr.bf16.mxu0 0
        %1094 = vmatpush1.bf16.xpose.msra.mxu0 0
        %1095 = vmatprep.subr.bf16.mxu0 0
        %1096 = vmatpush1.bf16.xpose.msra.mxu0 0
        %1097 = vmatprep.subr.bf16.mxu0 0
        %1098 = vmatpush1.bf16.xpose.msra.mxu0 0
        %1099 = vmatprep.subr.bf16.mxu0 0
        %1100 = vmatpush1.bf16.xpose.msra.mxu0 0
        %1101 = vmatprep.subr.bf16.mxu0 0
        %1102 = vmatpush1.bf16.xpose.msra.mxu0 0
        %1103 = vmatprep.mubr.bf16.mxu0 0
        %1104 = vmatmul.mubr.bf16.gmra.mrb[0].mxu0 %v1066
        %v1105 = vpop.f32.mrb[0].mxu0
        %v1106 = vadd.f32 0.0, %v1105
        %v1107 = vpop.f32.mrb[0].mxu0
        %v1108 = vpop.f32.mrb[0].mxu0
        %v1109 = vpop.f32.mrb[0].mxu0
        %1110 = vdwg.mxu0
        %v1111 = vmul.f32 %v1060, 0.35355338
        %v1112 = vmul.f32 %v1106, 0.35355338
        %v1113 = vsel %vm1018, %v1111, -inf
        %1114 = vmax.xlane.f32.xlu0 %v1113
        %v1115 = vpop.xlane.xlu0 %1114
        %v1116 = vsel %vm1018, %v1112, -inf
        %1117 = vmax.xlane.f32.xlu0 %v1116
        %v1118 = vpop.xlane.xlu0 %1117
        %v1119 = vsub.f32 %v1111, %v1115
        %v1120 = vsub.f32 %v1112, %v1118
        %v1121 = vmul.f32 %v1119, 1.442695
        %v1122 = vpow.pop %v1121
        %v1123 = vmul.f32 %v1120, 1.442695
        %v1124 = vpow.pop %v1123
        %v1125 = vsel %vm1018, %v1122, 0.0
        %1126 = vadd.xlane.f32.xlu0 %v1125
        %v1127 = vpop.xlane.xlu0 %1126
        %v1128 = vsel %vm1018, %v1124, 0.0
        %1129 = vadd.xlane.f32.xlu0 %v1128
        %v1130 = vpop.xlane.xlu0 %1129
        %v1131 = vpack.c.bf16 %v1122, %v1122
        %v1132 = vpack.c.bf16 %v1124, %v1124
        %v1134 = vsel %vm1018, %v1131, 0
        %vm1136 = vcmask 1043456
        %v1138 = vsel %vm1136, %v1010, 0
        %1140 = vmatprep.subr.bf16.mxu0 0
        %1141 = vmatpush1.bf16.msra.mxu0 %v1138
        %1142 = vmatprep.subr.bf16.mxu0 0
        %1143 = vmatpush1.bf16.msra.mxu0 0
        %1144 = vmatprep.subr.bf16.mxu0 0
        %1145 = vmatpush1.bf16.msra.mxu0 0
        %1146 = vmatprep.subr.bf16.mxu0 0
        %1147 = vmatpush1.bf16.msra.mxu0 0
        %1148 = vmatprep.subr.bf16.mxu0 0
        %1149 = vmatpush1.bf16.msra.mxu0 0
        %1150 = vmatprep.subr.bf16.mxu0 0
        %1151 = vmatpush1.bf16.msra.mxu0 0
        %1152 = vmatprep.subr.bf16.mxu0 0
        %1153 = vmatpush1.bf16.msra.mxu0 0
        %1154 = vmatprep.subr.bf16.mxu0 0
        %1155 = vmatpush1.bf16.msra.mxu0 0
        %1156 = vmatprep.subr.bf16.mxu0 0
        %1157 = vmatpush1.bf16.msra.mxu0 0
        %1158 = vmatprep.subr.bf16.mxu0 0
        %1159 = vmatpush1.bf16.msra.mxu0 0
        %1160 = vmatprep.subr.bf16.mxu0 0
        %1161 = vmatpush1.bf16.msra.mxu0 0
        %1162 = vmatprep.subr.bf16.mxu0 0
        %1163 = vmatpush1.bf16.msra.mxu0 0
        %1164 = vmatprep.subr.bf16.mxu0 0
        %1165 = vmatpush1.bf16.msra.mxu0 0
        %1166 = vmatprep.subr.bf16.mxu0 0
        %1167 = vmatpush1.bf16.msra.mxu0 0
        %1168 = vmatprep.subr.bf16.mxu0 0
        %1169 = vmatpush1.bf16.msra.mxu0 0
        %1170 = vmatprep.subr.bf16.mxu0 0
        %1171 = vmatpush1.bf16.msra.mxu0 0
        %1172 = vmatprep.mubr.bf16.mxu0 0
        %1173 = vmatmul.mubr.bf16.gmra.mrb[0].mxu0 %v1134
        %v1174 = vpop.f32.mrb[0].mxu0
        %v1175 = vadd.f32 0.0, %v1174
        %v1176 = vpop.f32.mrb[0].mxu0
        %v1177 = vpop.f32.mrb[0].mxu0
        %v1178 = vpop.f32.mrb[0].mxu0
        %1179 = vdwg.mxu0
        %v1181 = vsel %vm1018, %v1132, 0
        %v1184 = vsel %vm1136, %v1011, 0
        %1186 = vmatprep.subr.bf16.mxu0 0
        %1187 = vmatpush1.bf16.msra.mxu0 %v1184
        %1188 = vmatprep.subr.bf16.mxu0 0
        %1189 = vmatpush1.bf16.msra.mxu0 0
        %1190 = vmatprep.subr.bf16.mxu0 0
        %1191 = vmatpush1.bf16.msra.mxu0 0
        %1192 = vmatprep.subr.bf16.mxu0 0
        %1193 = vmatpush1.bf16.msra.mxu0 0
        %1194 = vmatprep.subr.bf16.mxu0 0
        %1195 = vmatpush1.bf16.msra.mxu0 0
        %1196 = vmatprep.subr.bf16.mxu0 0
        %1197 = vmatpush1.bf16.msra.mxu0 0
        %1198 = vmatprep.subr.bf16.mxu0 0
        %1199 = vmatpush1.bf16.msra.mxu0 0
        %1200 = vmatprep.subr.bf16.mxu0 0
        %1201 = vmatpush1.bf16.msra.mxu0 0
        %1202 = vmatprep.subr.bf16.mxu0 0
        %1203 = vmatpush1.bf16.msra.mxu0 0
        %1204 = vmatprep.subr.bf16.mxu0 0
        %1205 = vmatpush1.bf16.msra.mxu0 0
        %1206 = vmatprep.subr.bf16.mxu0 0
        %1207 = vmatpush1.bf16.msra.mxu0 0
        %1208 = vmatprep.subr.bf16.mxu0 0
        %1209 = vmatpush1.bf16.msra.mxu0 0
        %1210 = vmatprep.subr.bf16.mxu0 0
        %1211 = vmatpush1.bf16.msra.mxu0 0
        %1212 = vmatprep.subr.bf16.mxu0 0
        %1213 = vmatpush1.bf16.msra.mxu0 0
        %1214 = vmatprep.subr.bf16.mxu0 0
        %1215 = vmatpush1.bf16.msra.mxu0 0
        %1216 = vmatprep.subr.bf16.mxu0 0
        %1217 = vmatpush1.bf16.msra.mxu0 0
        %1218 = vmatprep.mubr.bf16.mxu0 0
        %1219 = vmatmul.mubr.bf16.gmra.mrb[0].mxu0 %v1181
        %v1220 = vpop.f32.mrb[0].mxu0
        %v1221 = vadd.f32 0.0, %v1220
        %v1222 = vpop.f32.mrb[0].mxu0
        %v1223 = vpop.f32.mrb[0].mxu0
        %v1224 = vpop.f32.mrb[0].mxu0
        %1225 = vdwg.mxu0
        %v1226 = vrcp.pop %v1127
        %v1227 = vrcp.pop %v1130
        %v1228 = vmul.f32 %v1175, %v1226
        %v1229 = vmul.f32 %v1221, %v1227
        %v1230 = vpack.c.bf16 %v1229, %v1228
        %1232 = vrot.lane.b32.xlu0 %v1006, 120
        %v1233 = vpop.permute.xlu0 %1232
        %1235 = vrot.lane.b32.xlu0 %v1008, 120
        %v1236 = vpop.permute.xlu0 %1235
        %v1238 = vsel %vm1018, %v1233, 0
        %v1241 = vsel %vm1018, %v1236, 0
        %1243 = vmatprep.subr.bf16.mxu0 0
        %1244 = vmatpush1.bf16.xpose.msra.mxu0 %v1241
        %1245 = vmatprep.subr.bf16.mxu0 0
        %1246 = vmatpush1.bf16.xpose.msra.mxu0 0
        %1247 = vmatprep.subr.bf16.mxu0 0
        %1248 = vmatpush1.bf16.xpose.msra.mxu0 0
        %1249 = vmatprep.subr.bf16.mxu0 0
        %1250 = vmatpush1.bf16.xpose.msra.mxu0 0
        %1251 = vmatprep.subr.bf16.mxu0 0
        %1252 = vmatpush1.bf16.xpose.msra.mxu0 0
        %1253 = vmatprep.subr.bf16.mxu0 0
        %1254 = vmatpush1.bf16.xpose.msra.mxu0 0
        %1255 = vmatprep.subr.bf16.mxu0 0
        %1256 = vmatpush1.bf16.xpose.msra.mxu0 0
        %1257 = vmatprep.subr.bf16.mxu0 0
        %1258 = vmatpush1.bf16.xpose.msra.mxu0 0
        %1259 = vmatprep.subr.bf16.mxu0 0
        %1260 = vmatpush1.bf16.xpose.msra.mxu0 0
        %1261 = vmatprep.subr.bf16.mxu0 0
        %1262 = vmatpush1.bf16.xpose.msra.mxu0 0
        %1263 = vmatprep.subr.bf16.mxu0 0
        %1264 = vmatpush1.bf16.xpose.msra.mxu0 0
        %1265 = vmatprep.subr.bf16.mxu0 0
        %1266 = vmatpush1.bf16.xpose.msra.mxu0 0
        %1267 = vmatprep.subr.bf16.mxu0 0
        %1268 = vmatpush1.bf16.xpose.msra.mxu0 0
        %1269 = vmatprep.subr.bf16.mxu0 0
        %1270 = vmatpush1.bf16.xpose.msra.mxu0 0
        %1271 = vmatprep.subr.bf16.mxu0 0
        %1272 = vmatpush1.bf16.xpose.msra.mxu0 0
        %1273 = vmatprep.subr.bf16.mxu0 0
        %1274 = vmatpush1.bf16.xpose.msra.mxu0 0
        %1275 = vmatprep.mubr.bf16.mxu0 0
        %1276 = vmatmul.mubr.bf16.gmra.mrb[0].mxu0 %v1238
        %v1277 = vpop.f32.mrb[0].mxu0
        %v1278 = vadd.f32 0.0, %v1277
        %v1279 = vpop.f32.mrb[0].mxu0
        %v1280 = vpop.f32.mrb[0].mxu0
        %v1281 = vpop.f32.mrb[0].mxu0
        %1282 = vdwg.mxu0
        %1284 = vrot.lane.b32.xlu0 %v1007, 120
        %v1285 = vpop.permute.xlu0 %1284
        %1287 = vrot.lane.b32.xlu0 %v1009, 120
        %v1288 = vpop.permute.xlu0 %1287
        %v1290 = vsel %vm1018, %v1285, 0
        %v1293 = vsel %vm1018, %v1288, 0
        %1295 = vmatprep.subr.bf16.mxu0 0
        %1296 = vmatpush1.bf16.xpose.msra.mxu0 %v1293
        %1297 = vmatprep.subr.bf16.mxu0 0
        %1298 = vmatpush1.bf16.xpose.msra.mxu0 0
        %1299 = vmatprep.subr.bf16.mxu0 0
        %1300 = vmatpush1.bf16.xpose.msra.mxu0 0
        %1301 = vmatprep.subr.bf16.mxu0 0
        %1302 = vmatpush1.bf16.xpose.msra.mxu0 0
        %1303 = vmatprep.subr.bf16.mxu0 0
        %1304 = vmatpush1.bf16.xpose.msra.mxu0 0
        %1305 = vmatprep.subr.bf16.mxu0 0
        %1306 = vmatpush1.bf16.xpose.msra.mxu0 0
        %1307 = vmatprep.subr.bf16.mxu0 0
        %1308 = vmatpush1.bf16.xpose.msra.mxu0 0
        %1309 = vmatprep.subr.bf16.mxu0 0
        %1310 = vmatpush1.bf16.xpose.msra.mxu0 0
        %1311 = vmatprep.subr.bf16.mxu0 0
        %1312 = vmatpush1.bf16.xpose.msra.mxu0 0
        %1313 = vmatprep.subr.bf16.mxu0 0
        %1314 = vmatpush1.bf16.xpose.msra.mxu0 0
        %1315 = vmatprep.subr.bf16.mxu0 0
        %1316 = vmatpush1.bf16.xpose.msra.mxu0 0
        %1317 = vmatprep.subr.bf16.mxu0 0
        %1318 = vmatpush1.bf16.xpose.msra.mxu0 0
        %1319 = vmatprep.subr.bf16.mxu0 0
        %1320 = vmatpush1.bf16.xpose.msra.mxu0 0
        %1321 = vmatprep.subr.bf16.mxu0 0
        %1322 = vmatpush1.bf16.xpose.msra.mxu0 0
        %1323 = vmatprep.subr.bf16.mxu0 0
        %1324 = vmatpush1.bf16.xpose.msra.mxu0 0
        %1325 = vmatprep.subr.bf16.mxu0 0
        %1326 = vmatpush1.bf16.xpose.msra.mxu0 0
        %1327 = vmatprep.mubr.bf16.mxu0 0
        %1328 = vmatmul.mubr.bf16.gmra.mrb[0].mxu0 %v1290
        %v1329 = vpop.f32.mrb[0].mxu0
        %v1330 = vadd.f32 0.0, %v1329
        %v1331 = vpop.f32.mrb[0].mxu0
        %v1332 = vpop.f32.mrb[0].mxu0
        %v1333 = vpop.f32.mrb[0].mxu0
        %1334 = vdwg.mxu0
        %v1335 = vmul.f32 %v1278, 0.35355338
        %v1336 = vmul.f32 %v1330, 0.35355338
        %v1337 = vsel %vm1018, %v1335, -inf
        %1338 = vmax.xlane.f32.xlu0 %v1337
        %v1339 = vpop.xlane.xlu0 %1338
        %v1340 = vsel %vm1018, %v1336, -inf
        %1341 = vmax.xlane.f32.xlu0 %v1340
        %v1342 = vpop.xlane.xlu0 %1341
        %v1343 = vsub.f32 %v1335, %v1339
        %v1344 = vsub.f32 %v1336, %v1342
        %v1345 = vmul.f32 %v1343, 1.442695
        %v1346 = vpow.pop %v1345
        %v1347 = vmul.f32 %v1344, 1.442695
        %v1348 = vpow.pop %v1347
        %v1349 = vsel %vm1018, %v1346, 0.0
        %1350 = vadd.xlane.f32.xlu0 %v1349
        %v1351 = vpop.xlane.xlu0 %1350
        %v1352 = vsel %vm1018, %v1348, 0.0
        %1353 = vadd.xlane.f32.xlu0 %v1352
        %v1354 = vpop.xlane.xlu0 %1353
        %v1355 = vpack.c.bf16 %v1346, %v1346
        %v1356 = vpack.c.bf16 %v1348, %v1348
        %1358 = vrot.lane.b32.xlu0 %v1010, 120
        %v1359 = vpop.permute.xlu0 %1358
        %v1361 = vsel %vm1018, %v1355, 0
        %v1364 = vsel %vm1136, %v1359, 0
        %1366 = vmatprep.subr.bf16.mxu0 0
        %1367 = vmatpush1.bf16.msra.mxu0 %v1364
        %1368 = vmatprep.subr.bf16.mxu0 0
        %1369 = vmatpush1.bf16.msra.mxu0 0
        %1370 = vmatprep.subr.bf16.mxu0 0
        %1371 = vmatpush1.bf16.msra.mxu0 0
        %1372 = vmatprep.subr.bf16.mxu0 0
        %1373 = vmatpush1.bf16.msra.mxu0 0
        %1374 = vmatprep.subr.bf16.mxu0 0
        %1375 = vmatpush1.bf16.msra.mxu0 0
        %1376 = vmatprep.subr.bf16.mxu0 0
        %1377 = vmatpush1.bf16.msra.mxu0 0
        %1378 = vmatprep.subr.bf16.mxu0 0
        %1379 = vmatpush1.bf16.msra.mxu0 0
        %1380 = vmatprep.subr.bf16.mxu0 0
        %1381 = vmatpush1.bf16.msra.mxu0 0
        %1382 = vmatprep.subr.bf16.mxu0 0
        %1383 = vmatpush1.bf16.msra.mxu0 0
        %1384 = vmatprep.subr.bf16.mxu0 0
        %1385 = vmatpush1.bf16.msra.mxu0 0
        %1386 = vmatprep.subr.bf16.mxu0 0
        %1387 = vmatpush1.bf16.msra.mxu0 0
        %1388 = vmatprep.subr.bf16.mxu0 0
        %1389 = vmatpush1.bf16.msra.mxu0 0
        %1390 = vmatprep.subr.bf16.mxu0 0
        %1391 = vmatpush1.bf16.msra.mxu0 0
        %1392 = vmatprep.subr.bf16.mxu0 0
        %1393 = vmatpush1.bf16.msra.mxu0 0
        %1394 = vmatprep.subr.bf16.mxu0 0
        %1395 = vmatpush1.bf16.msra.mxu0 0
        %1396 = vmatprep.subr.bf16.mxu0 0
        %1397 = vmatpush1.bf16.msra.mxu0 0
        %1398 = vmatprep.mubr.bf16.mxu0 0
        %1399 = vmatmul.mubr.bf16.gmra.mrb[0].mxu0 %v1361
        %v1400 = vpop.f32.mrb[0].mxu0
        %v1401 = vadd.f32 0.0, %v1400
        %v1402 = vpop.f32.mrb[0].mxu0
        %v1403 = vpop.f32.mrb[0].mxu0
        %v1404 = vpop.f32.mrb[0].mxu0
        %1405 = vdwg.mxu0
        %1407 = vrot.lane.b32.xlu0 %v1011, 120
        %v1408 = vpop.permute.xlu0 %1407
        %v1410 = vsel %vm1018, %v1356, 0
        %v1413 = vsel %vm1136, %v1408, 0
        %1415 = vmatprep.subr.bf16.mxu0 0
        %1416 = vmatpush1.bf16.msra.mxu0 %v1413
        %1417 = vmatprep.subr.bf16.mxu0 0
        %1418 = vmatpush1.bf16.msra.mxu0 0
        %1419 = vmatprep.subr.bf16.mxu0 0
        %1420 = vmatpush1.bf16.msra.mxu0 0
        %1421 = vmatprep.subr.bf16.mxu0 0
        %1422 = vmatpush1.bf16.msra.mxu0 0
        %1423 = vmatprep.subr.bf16.mxu0 0
        %1424 = vmatpush1.bf16.msra.mxu0 0
        %1425 = vmatprep.subr.bf16.mxu0 0
        %1426 = vmatpush1.bf16.msra.mxu0 0
        %1427 = vmatprep.subr.bf16.mxu0 0
        %1428 = vmatpush1.bf16.msra.mxu0 0
        %1429 = vmatprep.subr.bf16.mxu0 0
        %1430 = vmatpush1.bf16.msra.mxu0 0
        %1431 = vmatprep.subr.bf16.mxu0 0
        %1432 = vmatpush1.bf16.msra.mxu0 0
        %1433 = vmatprep.subr.bf16.mxu0 0
        %1434 = vmatpush1.bf16.msra.mxu0 0
        %1435 = vmatprep.subr.bf16.mxu0 0
        %1436 = vmatpush1.bf16.msra.mxu0 0
        %1437 = vmatprep.subr.bf16.mxu0 0
        %1438 = vmatpush1.bf16.msra.mxu0 0
        %1439 = vmatprep.subr.bf16.mxu0 0
        %1440 = vmatpush1.bf16.msra.mxu0 0
        %1441 = vmatprep.subr.bf16.mxu0 0
        %1442 = vmatpush1.bf16.msra.mxu0 0
        %1443 = vmatprep.subr.bf16.mxu0 0
        %1444 = vmatpush1.bf16.msra.mxu0 0
        %1445 = vmatprep.subr.bf16.mxu0 0
        %1446 = vmatpush1.bf16.msra.mxu0 0
        %1447 = vmatprep.mubr.bf16.mxu0 0
        %1448 = vmatmul.mubr.bf16.gmra.mrb[0].mxu0 %v1410
        %v1449 = vpop.f32.mrb[0].mxu0
        %v1450 = vadd.f32 0.0, %v1449
        %v1451 = vpop.f32.mrb[0].mxu0
        %v1452 = vpop.f32.mrb[0].mxu0
        %v1453 = vpop.f32.mrb[0].mxu0
        %1454 = vdwg.mxu0
        %v1455 = vrcp.pop %v1351
        %v1456 = vrcp.pop %v1354
        %v1457 = vmul.f32 %v1401, %v1455
        %v1458 = vmul.f32 %v1450, %v1456
        %v1459 = vpack.c.bf16 %v1458, %v1457
        %v1461 = vrot.slane %v1016, 4
        %v1463 = vsel %vm1018, %v1459, 0
        %v1466 = vsel %vm1136, %v1461, 0
        %1468 = vmatprep.subr.bf16.mxu0 0
        %1469 = vmatpush1.bf16.msra.mxu0 %v1466
        %1470 = vmatprep.subr.bf16.mxu0 0
        %1471 = vmatpush1.bf16.msra.mxu0 0
        %1472 = vmatprep.subr.bf16.mxu0 0
        %1473 = vmatpush1.bf16.msra.mxu0 0
        %1474 = vmatprep.subr.bf16.mxu0 0
        %1475 = vmatpush1.bf16.msra.mxu0 0
        %1476 = vmatprep.subr.bf16.mxu0 0
        %1477 = vmatpush1.bf16.msra.mxu0 0
        %1478 = vmatprep.subr.bf16.mxu0 0
        %1479 = vmatpush1.bf16.msra.mxu0 0
        %1480 = vmatprep.subr.bf16.mxu0 0
        %1481 = vmatpush1.bf16.msra.mxu0 0
        %1482 = vmatprep.subr.bf16.mxu0 0
        %1483 = vmatpush1.bf16.msra.mxu0 0
        %1484 = vmatprep.subr.bf16.mxu0 0
        %1485 = vmatpush1.bf16.msra.mxu0 0
        %1486 = vmatprep.subr.bf16.mxu0 0
        %1487 = vmatpush1.bf16.msra.mxu0 0
        %1488 = vmatprep.subr.bf16.mxu0 0
        %1489 = vmatpush1.bf16.msra.mxu0 0
        %1490 = vmatprep.subr.bf16.mxu0 0
        %1491 = vmatpush1.bf16.msra.mxu0 0
        %1492 = vmatprep.subr.bf16.mxu0 0
        %1493 = vmatpush1.bf16.msra.mxu0 0
        %1494 = vmatprep.subr.bf16.mxu0 0
        %1495 = vmatpush1.bf16.msra.mxu0 0
        %1496 = vmatprep.subr.bf16.mxu0 0
        %1497 = vmatpush1.bf16.msra.mxu0 0
        %1498 = vmatprep.subr.bf16.mxu0 0
        %1499 = vmatpush1.bf16.msra.mxu0 0
        %1500 = vmatprep.mubr.bf16.mxu0 0
        %1501 = vmatmul.mubr.bf16.gmra.mrb[0].mxu0 %v1463
        %v1502 = vpop.f32.mrb[0].mxu0
        %v1503 = vadd.f32 0.0, %v1502
        %v1504 = vpop.f32.mrb[0].mxu0
        %v1505 = vpop.f32.mrb[0].mxu0
        %v1506 = vadd.f32 0.0, %v1505
        %v1507 = vpop.f32.mrb[0].mxu0
        %1508 = vdwg.mxu0
        %v1510 = vsel %vm1018, %v1230, 0
        %v1513 = vsel %vm1136, %v1016, 0
        %1515 = vmatprep.subr.bf16.mxu0 0
        %1516 = vmatpush1.bf16.msra.mxu0 %v1513
        %1517 = vmatprep.subr.bf16.mxu0 0
        %1518 = vmatpush1.bf16.msra.mxu0 0
        %1519 = vmatprep.subr.bf16.mxu0 0
        %1520 = vmatpush1.bf16.msra.mxu0 0
        %1521 = vmatprep.subr.bf16.mxu0 0
        %1522 = vmatpush1.bf16.msra.mxu0 0
        %1523 = vmatprep.subr.bf16.mxu0 0
        %1524 = vmatpush1.bf16.msra.mxu0 0
        %1525 = vmatprep.subr.bf16.mxu0 0
        %1526 = vmatpush1.bf16.msra.mxu0 0
        %1527 = vmatprep.subr.bf16.mxu0 0
        %1528 = vmatpush1.bf16.msra.mxu0 0
        %1529 = vmatprep.subr.bf16.mxu0 0
        %1530 = vmatpush1.bf16.msra.mxu0 0
        %1531 = vmatprep.subr.bf16.mxu0 0
        %1532 = vmatpush1.bf16.msra.mxu0 0
        %1533 = vmatprep.subr.bf16.mxu0 0
        %1534 = vmatpush1.bf16.msra.mxu0 0
        %1535 = vmatprep.subr.bf16.mxu0 0
        %1536 = vmatpush1.bf16.msra.mxu0 0
        %1537 = vmatprep.subr.bf16.mxu0 0
        %1538 = vmatpush1.bf16.msra.mxu0 0
        %1539 = vmatprep.subr.bf16.mxu0 0
        %1540 = vmatpush1.bf16.msra.mxu0 0
        %1541 = vmatprep.subr.bf16.mxu0 0
        %1542 = vmatpush1.bf16.msra.mxu0 0
        %1543 = vmatprep.subr.bf16.mxu0 0
        %1544 = vmatpush1.bf16.msra.mxu0 0
        %1545 = vmatprep.subr.bf16.mxu0 0
        %1546 = vmatpush1.bf16.msra.mxu0 0
        %1547 = vmatprep.mubr.bf16.mxu0 0
        %1548 = vmatmul.mubr.bf16.gmra.mrb[0].mxu0 %v1510
        %v1549 = vpop.f32.mrb[0].mxu0
        %v1550 = vadd.f32 %v1503, %v1549
        %v1551 = vpop.f32.mrb[0].mxu0
        %v1552 = vpop.f32.mrb[0].mxu0
        %v1553 = vadd.f32 %v1506, %v1552
        %v1554 = vpop.f32.mrb[0].mxu0
        %1555 = vdwg.mxu0
        %1556 = vrot.lane.b32.xlu0 %v1006, 112
        %v1557 = vpop.permute.xlu0 %1556
        %1558 = vrot.lane.b32.xlu0 %v1008, 112
        %v1559 = vpop.permute.xlu0 %1558
        %v1561 = vsel %vm1018, %v1557, 0
        %v1564 = vsel %vm1018, %v1559, 0
        %1566 = vmatprep.subr.bf16.mxu0 0
        %1567 = vmatpush1.bf16.xpose.msra.mxu0 %v1564
        %1568 = vmatprep.subr.bf16.mxu0 0
        %1569 = vmatpush1.bf16.xpose.msra.mxu0 0
        %1570 = vmatprep.subr.bf16.mxu0 0
        %1571 = vmatpush1.bf16.xpose.msra.mxu0 0
        %1572 = vmatprep.subr.bf16.mxu0 0
        %1573 = vmatpush1.bf16.xpose.msra.mxu0 0
        %1574 = vmatprep.subr.bf16.mxu0 0
        %1575 = vmatpush1.bf16.xpose.msra.mxu0 0
        %1576 = vmatprep.subr.bf16.mxu0 0
        %1577 = vmatpush1.bf16.xpose.msra.mxu0 0
        %1578 = vmatprep.subr.bf16.mxu0 0
        %1579 = vmatpush1.bf16.xpose.msra.mxu0 0
        %1580 = vmatprep.subr.bf16.mxu0 0
        %1581 = vmatpush1.bf16.xpose.msra.mxu0 0
        %1582 = vmatprep.subr.bf16.mxu0 0
        %1583 = vmatpush1.bf16.xpose.msra.mxu0 0
        %1584 = vmatprep.subr.bf16.mxu0 0
        %1585 = vmatpush1.bf16.xpose.msra.mxu0 0
        %1586 = vmatprep.subr.bf16.mxu0 0
        %1587 = vmatpush1.bf16.xpose.msra.mxu0 0
        %1588 = vmatprep.subr.bf16.mxu0 0
        %1589 = vmatpush1.bf16.xpose.msra.mxu0 0
        %1590 = vmatprep.subr.bf16.mxu0 0
        %1591 = vmatpush1.bf16.xpose.msra.mxu0 0
        %1592 = vmatprep.subr.bf16.mxu0 0
        %1593 = vmatpush1.bf16.xpose.msra.mxu0 0
        %1594 = vmatprep.subr.bf16.mxu0 0
        %1595 = vmatpush1.bf16.xpose.msra.mxu0 0
        %1596 = vmatprep.subr.bf16.mxu0 0
        %1597 = vmatpush1.bf16.xpose.msra.mxu0 0
        %1598 = vmatprep.mubr.bf16.mxu0 0
        %1599 = vmatmul.mubr.bf16.gmra.mrb[0].mxu0 %v1561
        %v1600 = vpop.f32.mrb[0].mxu0
        %v1601 = vadd.f32 0.0, %v1600
        %v1602 = vpop.f32.mrb[0].mxu0
        %v1603 = vpop.f32.mrb[0].mxu0
        %v1604 = vpop.f32.mrb[0].mxu0
        %1605 = vdwg.mxu0
        %1606 = vrot.lane.b32.xlu0 %v1007, 112
        %v1607 = vpop.permute.xlu0 %1606
        %1608 = vrot.lane.b32.xlu0 %v1009, 112
        %v1609 = vpop.permute.xlu0 %1608
        %v1611 = vsel %vm1018, %v1607, 0
        %v1614 = vsel %vm1018, %v1609, 0
        %1616 = vmatprep.subr.bf16.mxu0 0
        %1617 = vmatpush1.bf16.xpose.msra.mxu0 %v1614
        %1618 = vmatprep.subr.bf16.mxu0 0
        %1619 = vmatpush1.bf16.xpose.msra.mxu0 0
        %1620 = vmatprep.subr.bf16.mxu0 0
        %1621 = vmatpush1.bf16.xpose.msra.mxu0 0
        %1622 = vmatprep.subr.bf16.mxu0 0
        %1623 = vmatpush1.bf16.xpose.msra.mxu0 0
        %1624 = vmatprep.subr.bf16.mxu0 0
        %1625 = vmatpush1.bf16.xpose.msra.mxu0 0
        %1626 = vmatprep.subr.bf16.mxu0 0
        %1627 = vmatpush1.bf16.xpose.msra.mxu0 0
        %1628 = vmatprep.subr.bf16.mxu0 0
        %1629 = vmatpush1.bf16.xpose.msra.mxu0 0
        %1630 = vmatprep.subr.bf16.mxu0 0
        %1631 = vmatpush1.bf16.xpose.msra.mxu0 0
        %1632 = vmatprep.subr.bf16.mxu0 0
        %1633 = vmatpush1.bf16.xpose.msra.mxu0 0
        %1634 = vmatprep.subr.bf16.mxu0 0
        %1635 = vmatpush1.bf16.xpose.msra.mxu0 0
        %1636 = vmatprep.subr.bf16.mxu0 0
        %1637 = vmatpush1.bf16.xpose.msra.mxu0 0
        %1638 = vmatprep.subr.bf16.mxu0 0
        %1639 = vmatpush1.bf16.xpose.msra.mxu0 0
        %1640 = vmatprep.subr.bf16.mxu0 0
        %1641 = vmatpush1.bf16.xpose.msra.mxu0 0
        %1642 = vmatprep.subr.bf16.mxu0 0
        %1643 = vmatpush1.bf16.xpose.msra.mxu0 0
        %1644 = vmatprep.subr.bf16.mxu0 0
        %1645 = vmatpush1.bf16.xpose.msra.mxu0 0
        %1646 = vmatprep.subr.bf16.mxu0 0
        %1647 = vmatpush1.bf16.xpose.msra.mxu0 0
        %1648 = vmatprep.mubr.bf16.mxu0 0
        %1649 = vmatmul.mubr.bf16.gmra.mrb[0].mxu0 %v1611
        %v1650 = vpop.f32.mrb[0].mxu0
        %v1651 = vadd.f32 0.0, %v1650
        %v1652 = vpop.f32.mrb[0].mxu0
        %v1653 = vpop.f32.mrb[0].mxu0
        %v1654 = vpop.f32.mrb[0].mxu0
        %1655 = vdwg.mxu0
        %v1656 = vmul.f32 %v1601, 0.35355338
        %v1657 = vmul.f32 %v1651, 0.35355338
        %v1658 = vsel %vm1018, %v1656, -inf
        %1659 = vmax.xlane.f32.xlu0 %v1658
        %v1660 = vpop.xlane.xlu0 %1659
        %v1661 = vsel %vm1018, %v1657, -inf
        %1662 = vmax.xlane.f32.xlu0 %v1661
        %v1663 = vpop.xlane.xlu0 %1662
        %v1664 = vsub.f32 %v1656, %v1660
        %v1665 = vsub.f32 %v1657, %v1663
        %v1666 = vmul.f32 %v1664, 1.442695
        %v1667 = vpow.pop %v1666
        %v1668 = vmul.f32 %v1665, 1.442695
        %v1669 = vpow.pop %v1668
        %v1670 = vsel %vm1018, %v1667, 0.0
        %1671 = vadd.xlane.f32.xlu0 %v1670
        %v1672 = vpop.xlane.xlu0 %1671
        %v1673 = vsel %vm1018, %v1669, 0.0
        %1674 = vadd.xlane.f32.xlu0 %v1673
        %v1675 = vpop.xlane.xlu0 %1674
        %v1676 = vpack.c.bf16 %v1667, %v1667
        %v1677 = vpack.c.bf16 %v1669, %v1669
        %1678 = vrot.lane.b32.xlu0 %v1010, 112
        %v1679 = vpop.permute.xlu0 %1678
        %v1681 = vsel %vm1018, %v1676, 0
        %v1684 = vsel %vm1136, %v1679, 0
        %1686 = vmatprep.subr.bf16.mxu0 0
        %1687 = vmatpush1.bf16.msra.mxu0 %v1684
        %1688 = vmatprep.subr.bf16.mxu0 0
        %1689 = vmatpush1.bf16.msra.mxu0 0
        %1690 = vmatprep.subr.bf16.mxu0 0
        %1691 = vmatpush1.bf16.msra.mxu0 0
        %1692 = vmatprep.subr.bf16.mxu0 0
        %1693 = vmatpush1.bf16.msra.mxu0 0
        %1694 = vmatprep.subr.bf16.mxu0 0
        %1695 = vmatpush1.bf16.msra.mxu0 0
        %1696 = vmatprep.subr.bf16.mxu0 0
        %1697 = vmatpush1.bf16.msra.mxu0 0
        %1698 = vmatprep.subr.bf16.mxu0 0
        %1699 = vmatpush1.bf16.msra.mxu0 0
        %1700 = vmatprep.subr.bf16.mxu0 0
        %1701 = vmatpush1.bf16.msra.mxu0 0
        %1702 = vmatprep.subr.bf16.mxu0 0
        %1703 = vmatpush1.bf16.msra.mxu0 0
        %1704 = vmatprep.subr.bf16.mxu0 0
        %1705 = vmatpush1.bf16.msra.mxu0 0
        %1706 = vmatprep.subr.bf16.mxu0 0
        %1707 = vmatpush1.bf16.msra.mxu0 0
        %1708 = vmatprep.subr.bf16.mxu0 0
        %1709 = vmatpush1.bf16.msra.mxu0 0
        %1710 = vmatprep.subr.bf16.mxu0 0
        %1711 = vmatpush1.bf16.msra.mxu0 0
        %1712 = vmatprep.subr.bf16.mxu0 0
        %1713 = vmatpush1.bf16.msra.mxu0 0
        %1714 = vmatprep.subr.bf16.mxu0 0
        %1715 = vmatpush1.bf16.msra.mxu0 0
        %1716 = vmatprep.subr.bf16.mxu0 0
        %1717 = vmatpush1.bf16.msra.mxu0 0
        %1718 = vmatprep.mubr.bf16.mxu0 0
        %1719 = vmatmul.mubr.bf16.gmra.mrb[0].mxu0 %v1681
        %v1720 = vpop.f32.mrb[0].mxu0
        %v1721 = vadd.f32 0.0, %v1720
        %v1722 = vpop.f32.mrb[0].mxu0
        %v1723 = vpop.f32.mrb[0].mxu0
        %v1724 = vpop.f32.mrb[0].mxu0
        %1725 = vdwg.mxu0
        %1726 = vrot.lane.b32.xlu0 %v1011, 112
        %v1727 = vpop.permute.xlu0 %1726
        %v1729 = vsel %vm1018, %v1677, 0
        %v1732 = vsel %vm1136, %v1727, 0
        %1734 = vmatprep.subr.bf16.mxu0 0
        %1735 = vmatpush1.bf16.msra.mxu0 %v1732
        %1736 = vmatprep.subr.bf16.mxu0 0
        %1737 = vmatpush1.bf16.msra.mxu0 0
        %1738 = vmatprep.subr.bf16.mxu0 0
        %1739 = vmatpush1.bf16.msra.mxu0 0
        %1740 = vmatprep.subr.bf16.mxu0 0
        %1741 = vmatpush1.bf16.msra.mxu0 0
        %1742 = vmatprep.subr.bf16.mxu0 0
        %1743 = vmatpush1.bf16.msra.mxu0 0
        %1744 = vmatprep.subr.bf16.mxu0 0
        %1745 = vmatpush1.bf16.msra.mxu0 0
        %1746 = vmatprep.subr.bf16.mxu0 0
        %1747 = vmatpush1.bf16.msra.mxu0 0
        %1748 = vmatprep.subr.bf16.mxu0 0
        %1749 = vmatpush1.bf16.msra.mxu0 0
        %1750 = vmatprep.subr.bf16.mxu0 0
        %1751 = vmatpush1.bf16.msra.mxu0 0
        %1752 = vmatprep.subr.bf16.mxu0 0
        %1753 = vmatpush1.bf16.msra.mxu0 0
        %1754 = vmatprep.subr.bf16.mxu0 0
        %1755 = vmatpush1.bf16.msra.mxu0 0
        %1756 = vmatprep.subr.bf16.mxu0 0
        %1757 = vmatpush1.bf16.msra.mxu0 0
        %1758 = vmatprep.subr.bf16.mxu0 0
        %1759 = vmatpush1.bf16.msra.mxu0 0
        %1760 = vmatprep.subr.bf16.mxu0 0
        %1761 = vmatpush1.bf16.msra.mxu0 0
        %1762 = vmatprep.subr.bf16.mxu0 0
        %1763 = vmatpush1.bf16.msra.mxu0 0
        %1764 = vmatprep.subr.bf16.mxu0 0
        %1765 = vmatpush1.bf16.msra.mxu0 0
        %1766 = vmatprep.mubr.bf16.mxu0 0
        %1767 = vmatmul.mubr.bf16.gmra.mrb[0].mxu0 %v1729
        %v1768 = vpop.f32.mrb[0].mxu0
        %v1769 = vadd.f32 0.0, %v1768
        %v1770 = vpop.f32.mrb[0].mxu0
        %v1771 = vpop.f32.mrb[0].mxu0
        %v1772 = vpop.f32.mrb[0].mxu0
        %1773 = vdwg.mxu0
        %v1774 = vrcp.pop %v1672
        %v1775 = vrcp.pop %v1675
        %v1776 = vmul.f32 %v1721, %v1774
        %v1777 = vmul.f32 %v1769, %v1775
        %v1778 = vpack.c.bf16 %v1777, %v1776
        %v1780 = vsel %vm1018, %v1778, 0
        %v1783 = vsel %vm1136, %v1017, 0
        %1785 = vmatprep.subr.bf16.mxu0 0
        %1786 = vmatpush1.bf16.msra.mxu0 %v1783
        %1787 = vmatprep.subr.bf16.mxu0 0
        %1788 = vmatpush1.bf16.msra.mxu0 0
        %1789 = vmatprep.subr.bf16.mxu0 0
        %1790 = vmatpush1.bf16.msra.mxu0 0
        %1791 = vmatprep.subr.bf16.mxu0 0
        %1792 = vmatpush1.bf16.msra.mxu0 0
        %1793 = vmatprep.subr.bf16.mxu0 0
        %1794 = vmatpush1.bf16.msra.mxu0 0
        %1795 = vmatprep.subr.bf16.mxu0 0
        %1796 = vmatpush1.bf16.msra.mxu0 0
        %1797 = vmatprep.subr.bf16.mxu0 0
        %1798 = vmatpush1.bf16.msra.mxu0 0
        %1799 = vmatprep.subr.bf16.mxu0 0
        %1800 = vmatpush1.bf16.msra.mxu0 0
        %1801 = vmatprep.subr.bf16.mxu0 0
        %1802 = vmatpush1.bf16.msra.mxu0 0
        %1803 = vmatprep.subr.bf16.mxu0 0
        %1804 = vmatpush1.bf16.msra.mxu0 0
        %1805 = vmatprep.subr.bf16.mxu0 0
        %1806 = vmatpush1.bf16.msra.mxu0 0
        %1807 = vmatprep.subr.bf16.mxu0 0
        %1808 = vmatpush1.bf16.msra.mxu0 0
        %1809 = vmatprep.subr.bf16.mxu0 0
        %1810 = vmatpush1.bf16.msra.mxu0 0
        %1811 = vmatprep.subr.bf16.mxu0 0
        %1812 = vmatpush1.bf16.msra.mxu0 0
        %1813 = vmatprep.subr.bf16.mxu0 0
        %1814 = vmatpush1.bf16.msra.mxu0 0
        %1815 = vmatprep.subr.bf16.mxu0 0
        %1816 = vmatpush1.bf16.msra.mxu0 0
        %1817 = vmatprep.mubr.bf16.mxu0 0
        %1818 = vmatmul.mubr.bf16.gmra.mrb[0].mxu0 %v1780
        %v1819 = vpop.f32.mrb[0].mxu0
        %v1820 = vadd.f32 0.0, %v1819
        %v1821 = vpop.f32.mrb[0].mxu0
        %v1822 = vpop.f32.mrb[0].mxu0
        %v1823 = vadd.f32 0.0, %v1822
        %v1824 = vpop.f32.mrb[0].mxu0
        %1825 = vdwg.mxu0
        %v1826 = vadd.f32 %v1550, %v1820
        %v1827 = vadd.f32 %v1553, %v1823
        %1828 = vrot.lane.b32.xlu0 %v1006, 104
        %v1829 = vpop.permute.xlu0 %1828
        %1830 = vrot.lane.b32.xlu0 %v1008, 104
        %v1831 = vpop.permute.xlu0 %1830
        %v1833 = vsel %vm1018, %v1829, 0
        %v1836 = vsel %vm1018, %v1831, 0
        %1838 = vmatprep.subr.bf16.mxu0 0
        %1839 = vmatpush1.bf16.xpose.msra.mxu0 %v1836
        %1840 = vmatprep.subr.bf16.mxu0 0
        %1841 = vmatpush1.bf16.xpose.msra.mxu0 0
        %1842 = vmatprep.subr.bf16.mxu0 0
        %1843 = vmatpush1.bf16.xpose.msra.mxu0 0
        %1844 = vmatprep.subr.bf16.mxu0 0
        %1845 = vmatpush1.bf16.xpose.msra.mxu0 0
        %1846 = vmatprep.subr.bf16.mxu0 0
        %1847 = vmatpush1.bf16.xpose.msra.mxu0 0
        %1848 = vmatprep.subr.bf16.mxu0 0
        %1849 = vmatpush1.bf16.xpose.msra.mxu0 0
        %1850 = vmatprep.subr.bf16.mxu0 0
        %1851 = vmatpush1.bf16.xpose.msra.mxu0 0
        %1852 = vmatprep.subr.bf16.mxu0 0
        %1853 = vmatpush1.bf16.xpose.msra.mxu0 0
        %1854 = vmatprep.subr.bf16.mxu0 0
        %1855 = vmatpush1.bf16.xpose.msra.mxu0 0
        %1856 = vmatprep.subr.bf16.mxu0 0
        %1857 = vmatpush1.bf16.xpose.msra.mxu0 0
        %1858 = vmatprep.subr.bf16.mxu0 0
        %1859 = vmatpush1.bf16.xpose.msra.mxu0 0
        %1860 = vmatprep.subr.bf16.mxu0 0
        %1861 = vmatpush1.bf16.xpose.msra.mxu0 0
        %1862 = vmatprep.subr.bf16.mxu0 0
        %1863 = vmatpush1.bf16.xpose.msra.mxu0 0
        %1864 = vmatprep.subr.bf16.mxu0 0
        %1865 = vmatpush1.bf16.xpose.msra.mxu0 0
        %1866 = vmatprep.subr.bf16.mxu0 0
        %1867 = vmatpush1.bf16.xpose.msra.mxu0 0
        %1868 = vmatprep.subr.bf16.mxu0 0
        %1869 = vmatpush1.bf16.xpose.msra.mxu0 0
        %1870 = vmatprep.mubr.bf16.mxu0 0
        %1871 = vmatmul.mubr.bf16.gmra.mrb[0].mxu0 %v1833
        %v1872 = vpop.f32.mrb[0].mxu0
        %v1873 = vadd.f32 0.0, %v1872
        %v1874 = vpop.f32.mrb[0].mxu0
        %v1875 = vpop.f32.mrb[0].mxu0
        %v1876 = vpop.f32.mrb[0].mxu0
        %1877 = vdwg.mxu0
        %1878 = vrot.lane.b32.xlu0 %v1007, 104
        %v1879 = vpop.permute.xlu0 %1878
        %1880 = vrot.lane.b32.xlu0 %v1009, 104
        %v1881 = vpop.permute.xlu0 %1880
        %v1883 = vsel %vm1018, %v1879, 0
        %v1886 = vsel %vm1018, %v1881, 0
        %1888 = vmatprep.subr.bf16.mxu0 0
        %1889 = vmatpush1.bf16.xpose.msra.mxu0 %v1886
        %1890 = vmatprep.subr.bf16.mxu0 0
        %1891 = vmatpush1.bf16.xpose.msra.mxu0 0
        %1892 = vmatprep.subr.bf16.mxu0 0
        %1893 = vmatpush1.bf16.xpose.msra.mxu0 0
        %1894 = vmatprep.subr.bf16.mxu0 0
        %1895 = vmatpush1.bf16.xpose.msra.mxu0 0
        %1896 = vmatprep.subr.bf16.mxu0 0
        %1897 = vmatpush1.bf16.xpose.msra.mxu0 0
        %1898 = vmatprep.subr.bf16.mxu0 0
        %1899 = vmatpush1.bf16.xpose.msra.mxu0 0
        %1900 = vmatprep.subr.bf16.mxu0 0
        %1901 = vmatpush1.bf16.xpose.msra.mxu0 0
        %1902 = vmatprep.subr.bf16.mxu0 0
        %1903 = vmatpush1.bf16.xpose.msra.mxu0 0
        %1904 = vmatprep.subr.bf16.mxu0 0
        %1905 = vmatpush1.bf16.xpose.msra.mxu0 0
        %1906 = vmatprep.subr.bf16.mxu0 0
        %1907 = vmatpush1.bf16.xpose.msra.mxu0 0
        %1908 = vmatprep.subr.bf16.mxu0 0
        %1909 = vmatpush1.bf16.xpose.msra.mxu0 0
        %1910 = vmatprep.subr.bf16.mxu0 0
        %1911 = vmatpush1.bf16.xpose.msra.mxu0 0
        %1912 = vmatprep.subr.bf16.mxu0 0
        %1913 = vmatpush1.bf16.xpose.msra.mxu0 0
        %1914 = vmatprep.subr.bf16.mxu0 0
        %1915 = vmatpush1.bf16.xpose.msra.mxu0 0
        %1916 = vmatprep.subr.bf16.mxu0 0
        %1917 = vmatpush1.bf16.xpose.msra.mxu0 0
        %1918 = vmatprep.subr.bf16.mxu0 0
        %1919 = vmatpush1.bf16.xpose.msra.mxu0 0
        %1920 = vmatprep.mubr.bf16.mxu0 0
        %1921 = vmatmul.mubr.bf16.gmra.mrb[0].mxu0 %v1883
        %v1922 = vpop.f32.mrb[0].mxu0
        %v1923 = vadd.f32 0.0, %v1922
        %v1924 = vpop.f32.mrb[0].mxu0
        %v1925 = vpop.f32.mrb[0].mxu0
        %v1926 = vpop.f32.mrb[0].mxu0
        %1927 = vdwg.mxu0
        %v1928 = vmul.f32 %v1873, 0.35355338
        %v1929 = vmul.f32 %v1923, 0.35355338
        %v1930 = vsel %vm1018, %v1928, -inf
        %1931 = vmax.xlane.f32.xlu0 %v1930
        %v1932 = vpop.xlane.xlu0 %1931
        %v1933 = vsel %vm1018, %v1929, -inf
        %1934 = vmax.xlane.f32.xlu0 %v1933
        %v1935 = vpop.xlane.xlu0 %1934
        %v1936 = vsub.f32 %v1928, %v1932
        %v1937 = vsub.f32 %v1929, %v1935
        %v1938 = vmul.f32 %v1936, 1.442695
        %v1939 = vpow.pop %v1938
        %v1940 = vmul.f32 %v1937, 1.442695
        %v1941 = vpow.pop %v1940
        %v1942 = vsel %vm1018, %v1939, 0.0
        %1943 = vadd.xlane.f32.xlu0 %v1942
        %v1944 = vpop.xlane.xlu0 %1943
        %v1945 = vsel %vm1018, %v1941, 0.0
        %1946 = vadd.xlane.f32.xlu0 %v1945
        %v1947 = vpop.xlane.xlu0 %1946
        %v1948 = vpack.c.bf16 %v1939, %v1939
        %v1949 = vpack.c.bf16 %v1941, %v1941
        %1950 = vrot.lane.b32.xlu0 %v1010, 104
        %v1951 = vpop.permute.xlu0 %1950
        %v1953 = vsel %vm1018, %v1948, 0
        %v1956 = vsel %vm1136, %v1951, 0
        %1958 = vmatprep.subr.bf16.mxu0 0
        %1959 = vmatpush1.bf16.msra.mxu0 %v1956
        %1960 = vmatprep.subr.bf16.mxu0 0
        %1961 = vmatpush1.bf16.msra.mxu0 0
        %1962 = vmatprep.subr.bf16.mxu0 0
        %1963 = vmatpush1.bf16.msra.mxu0 0
        %1964 = vmatprep.subr.bf16.mxu0 0
        %1965 = vmatpush1.bf16.msra.mxu0 0
        %1966 = vmatprep.subr.bf16.mxu0 0
        %1967 = vmatpush1.bf16.msra.mxu0 0
        %1968 = vmatprep.subr.bf16.mxu0 0
        %1969 = vmatpush1.bf16.msra.mxu0 0
        %1970 = vmatprep.subr.bf16.mxu0 0
        %1971 = vmatpush1.bf16.msra.mxu0 0
        %1972 = vmatprep.subr.bf16.mxu0 0
        %1973 = vmatpush1.bf16.msra.mxu0 0
        %1974 = vmatprep.subr.bf16.mxu0 0
        %1975 = vmatpush1.bf16.msra.mxu0 0
        %1976 = vmatprep.subr.bf16.mxu0 0
        %1977 = vmatpush1.bf16.msra.mxu0 0
        %1978 = vmatprep.subr.bf16.mxu0 0
        %1979 = vmatpush1.bf16.msra.mxu0 0
        %1980 = vmatprep.subr.bf16.mxu0 0
        %1981 = vmatpush1.bf16.msra.mxu0 0
        %1982 = vmatprep.subr.bf16.mxu0 0
        %1983 = vmatpush1.bf16.msra.mxu0 0
        %1984 = vmatprep.subr.bf16.mxu0 0
        %1985 = vmatpush1.bf16.msra.mxu0 0
        %1986 = vmatprep.subr.bf16.mxu0 0
        %1987 = vmatpush1.bf16.msra.mxu0 0
        %1988 = vmatprep.subr.bf16.mxu0 0
        %1989 = vmatpush1.bf16.msra.mxu0 0
        %1990 = vmatprep.mubr.bf16.mxu0 0
        %1991 = vmatmul.mubr.bf16.gmra.mrb[0].mxu0 %v1953
        %v1992 = vpop.f32.mrb[0].mxu0
        %v1993 = vadd.f32 0.0, %v1992
        %v1994 = vpop.f32.mrb[0].mxu0
        %v1995 = vpop.f32.mrb[0].mxu0
        %v1996 = vpop.f32.mrb[0].mxu0
        %1997 = vdwg.mxu0
        %1998 = vrot.lane.b32.xlu0 %v1011, 104
        %v1999 = vpop.permute.xlu0 %1998
        %v2001 = vsel %vm1018, %v1949, 0
        %v2004 = vsel %vm1136, %v1999, 0
        %2006 = vmatprep.subr.bf16.mxu0 0
        %2007 = vmatpush1.bf16.msra.mxu0 %v2004
        %2008 = vmatprep.subr.bf16.mxu0 0
        %2009 = vmatpush1.bf16.msra.mxu0 0
        %2010 = vmatprep.subr.bf16.mxu0 0
        %2011 = vmatpush1.bf16.msra.mxu0 0
        %2012 = vmatprep.subr.bf16.mxu0 0
        %2013 = vmatpush1.bf16.msra.mxu0 0
        %2014 = vmatprep.subr.bf16.mxu0 0
        %2015 = vmatpush1.bf16.msra.mxu0 0
        %2016 = vmatprep.subr.bf16.mxu0 0
        %2017 = vmatpush1.bf16.msra.mxu0 0
        %2018 = vmatprep.subr.bf16.mxu0 0
        %2019 = vmatpush1.bf16.msra.mxu0 0
        %2020 = vmatprep.subr.bf16.mxu0 0
        %2021 = vmatpush1.bf16.msra.mxu0 0
        %2022 = vmatprep.subr.bf16.mxu0 0
        %2023 = vmatpush1.bf16.msra.mxu0 0
        %2024 = vmatprep.subr.bf16.mxu0 0
        %2025 = vmatpush1.bf16.msra.mxu0 0
        %2026 = vmatprep.subr.bf16.mxu0 0
        %2027 = vmatpush1.bf16.msra.mxu0 0
        %2028 = vmatprep.subr.bf16.mxu0 0
        %2029 = vmatpush1.bf16.msra.mxu0 0
        %2030 = vmatprep.subr.bf16.mxu0 0
        %2031 = vmatpush1.bf16.msra.mxu0 0
        %2032 = vmatprep.subr.bf16.mxu0 0
        %2033 = vmatpush1.bf16.msra.mxu0 0
        %2034 = vmatprep.subr.bf16.mxu0 0
        %2035 = vmatpush1.bf16.msra.mxu0 0
        %2036 = vmatprep.subr.bf16.mxu0 0
        %2037 = vmatpush1.bf16.msra.mxu0 0
        %2038 = vmatprep.mubr.bf16.mxu0 0
        %2039 = vmatmul.mubr.bf16.gmra.mrb[0].mxu0 %v2001
        %v2040 = vpop.f32.mrb[0].mxu0
        %v2041 = vadd.f32 0.0, %v2040
        %v2042 = vpop.f32.mrb[0].mxu0
        %v2043 = vpop.f32.mrb[0].mxu0
        %v2044 = vpop.f32.mrb[0].mxu0
        %2045 = vdwg.mxu0
        %v2046 = vrcp.pop %v1944
        %v2047 = vrcp.pop %v1947
        %v2048 = vmul.f32 %v1993, %v2046
        %v2049 = vmul.f32 %v2041, %v2047
        %v2050 = vpack.c.bf16 %v2049, %v2048
        %v2052 = vrot.slane %v1017, 4
        %v2054 = vsel %vm1018, %v2050, 0
        %v2057 = vsel %vm1136, %v2052, 0
        %2059 = vmatprep.subr.bf16.mxu0 0
        %2060 = vmatpush1.bf16.msra.mxu0 %v2057
        %2061 = vmatprep.subr.bf16.mxu0 0
        %2062 = vmatpush1.bf16.msra.mxu0 0
        %2063 = vmatprep.subr.bf16.mxu0 0
        %2064 = vmatpush1.bf16.msra.mxu0 0
        %2065 = vmatprep.subr.bf16.mxu0 0
        %2066 = vmatpush1.bf16.msra.mxu0 0
        %2067 = vmatprep.subr.bf16.mxu0 0
        %2068 = vmatpush1.bf16.msra.mxu0 0
        %2069 = vmatprep.subr.bf16.mxu0 0
        %2070 = vmatpush1.bf16.msra.mxu0 0
        %2071 = vmatprep.subr.bf16.mxu0 0
        %2072 = vmatpush1.bf16.msra.mxu0 0
        %2073 = vmatprep.subr.bf16.mxu0 0
        %2074 = vmatpush1.bf16.msra.mxu0 0
        %2075 = vmatprep.subr.bf16.mxu0 0
        %2076 = vmatpush1.bf16.msra.mxu0 0
        %2077 = vmatprep.subr.bf16.mxu0 0
        %2078 = vmatpush1.bf16.msra.mxu0 0
        %2079 = vmatprep.subr.bf16.mxu0 0
        %2080 = vmatpush1.bf16.msra.mxu0 0
        %2081 = vmatprep.subr.bf16.mxu0 0
        %2082 = vmatpush1.bf16.msra.mxu0 0
        %2083 = vmatprep.subr.bf16.mxu0 0
        %2084 = vmatpush1.bf16.msra.mxu0 0
        %2085 = vmatprep.subr.bf16.mxu0 0
        %2086 = vmatpush1.bf16.msra.mxu0 0
        %2087 = vmatprep.subr.bf16.mxu0 0
        %2088 = vmatpush1.bf16.msra.mxu0 0
        %2089 = vmatprep.subr.bf16.mxu0 0
        %2090 = vmatpush1.bf16.msra.mxu0 0
        %2091 = vmatprep.mubr.bf16.mxu0 0
        %2092 = vmatmul.mubr.bf16.gmra.mrb[0].mxu0 %v2054
        %v2093 = vpop.f32.mrb[0].mxu0
        %v2094 = vadd.f32 0.0, %v2093
        %v2095 = vpop.f32.mrb[0].mxu0
        %v2096 = vpop.f32.mrb[0].mxu0
        %v2097 = vadd.f32 0.0, %v2096
        %v2098 = vpop.f32.mrb[0].mxu0
        %2099 = vdwg.mxu0
        %v2100 = vadd.f32 %v1826, %v2094
        %v2101 = vadd.f32 %v1827, %v2097
        %v2102 = vld [vmem:[%s803] sm:$0x1]
        %v2104 = vlaneseq
        %v2105 = vshrl.u32 %v2104, 7
        %v2106 = vsub.s32 0, %v2105
        %v2107 = vrot.slane %v2102, %v2106
        %v2109 = vadd.f32 %v2100, %v2107
        %v2110 = vadd.f32 %v2101, %v2107
        %v2111 = vadd.f32 %v837, %v2109
        %v2112 = vadd.f32 %v838, %v2110
        %v2113 = vsel %vm853, %v2111, 0.0
        %2114 = vadd.xlane.f32.xlu0 %v2113
        %v2115 = vpop.xlane.xlu0 %2114
        %v2116 = vsel %vm853, %v2112, 0.0
        %2117 = vadd.xlane.f32.xlu0 %v2116
        %v2118 = vpop.xlane.xlu0 %2117
        %v2119 = vrcp.pop 32.0
        %v2120 = vmul.f32 %v2115, %v2119
        %v2121 = vmul.f32 %v2118, %v2119
        %v2122 = vsub.f32 %v2111, %v2120
        %v2123 = vsub.f32 %v2112, %v2121
        %v2124 = vmul.f32 %v2122, %v2122
        %v2125 = vmul.f32 %v2123, %v2123
        %v2126 = vsel %vm853, %v2124, 0.0
        %2127 = vadd.xlane.f32.xlu0 %v2126
        %v2128 = vpop.xlane.xlu0 %2127
        %v2129 = vsel %vm853, %v2125, 0.0
        %2130 = vadd.xlane.f32.xlu0 %v2129
        %v2131 = vpop.xlane.xlu0 %2130
        %v2132 = vmul.f32 %v2128, %v2119
        %v2133 = vmul.f32 %v2131, %v2119
        %v2134 = vadd.f32 %v2132, 1e-05
        %v2135 = vadd.f32 %v2133, 1e-05
        %v2136 = vrsqrt.pop %v2134
        %v2137 = vrsqrt.pop %v2135
        %v2138 = vmul.f32 %v2122, %v2136
        %v2139 = vmul.f32 %v2123, %v2137
        %v2140 = vld [vmem:[%s806] sm:$0x1]
        %v2142 = vlaneseq
        %v2143 = vshrl.u32 %v2142, 7
        %v2144 = vsub.s32 0, %v2143
        %v2145 = vrot.slane %v2140, %v2144
        %v2147 = vmul.f32 %v2138, %v2145
        %v2148 = vmul.f32 %v2139, %v2145
        %v2149 = vld [vmem:[%s809] sm:$0x1]
        %v2151 = vlaneseq
        %v2152 = vshrl.u32 %v2151, 7
        %v2153 = vsub.s32 0, %v2152
        %v2154 = vrot.slane %v2149, %v2153
        %v2156 = vadd.f32 %v2147, %v2154
        %v2157 = vadd.f32 %v2148, %v2154
        %v2158 = vld [vmem:[%s676] sm:$0xff]
        %v2159 = vld [vmem:[%s676 + $0x8] sm:$0xff]
        %v2160 = vld [vmem:[%s676 + $0x10] sm:$0xff]
        %v2161 = vld [vmem:[%s676 + $0x18] sm:$0xff]
        %v2162 = vpack.c.bf16 %v2157, %v2156
        %v2163 = vpack.c.bf16 %v2159, %v2158
        %v2164 = vpack.c.bf16 %v2161, %v2160
        %v2165 = vld [vmem:[%s812] sm:$0x1]
        %v2167 = vlaneseq
        %v2168 = vshrl.u32 %v2167, 7
        %v2169 = vsub.s32 0, %v2168
        %v2170 = vrot.slane %v2165, %v2169
        %v2173 = vsel %vm853, %v2162, 0
        %2175 = vmatprep.subr.bf16.mxu0 0
        %2176 = vmatpush1.bf16.msra.mxu0 %v2163
        %2177 = vmatprep.subr.bf16.mxu0 0
        %2178 = vmatpush1.bf16.msra.mxu0 %v2164
        %2179 = vmatprep.subr.bf16.mxu0 0
        %2180 = vmatpush1.bf16.msra.mxu0 0
        %2181 = vmatprep.subr.bf16.mxu0 0
        %2182 = vmatpush1.bf16.msra.mxu0 0
        %2183 = vmatprep.subr.bf16.mxu0 0
        %2184 = vmatpush1.bf16.msra.mxu0 0
        %2185 = vmatprep.subr.bf16.mxu0 0
        %2186 = vmatpush1.bf16.msra.mxu0 0
        %2187 = vmatprep.subr.bf16.mxu0 0
        %2188 = vmatpush1.bf16.msra.mxu0 0
        %2189 = vmatprep.subr.bf16.mxu0 0
        %2190 = vmatpush1.bf16.msra.mxu0 0
        %2191 = vmatprep.subr.bf16.mxu0 0
        %2192 = vmatpush1.bf16.msra.mxu0 0
        %2193 = vmatprep.subr.bf16.mxu0 0
        %2194 = vmatpush1.bf16.msra.mxu0 0
        %2195 = vmatprep.subr.bf16.mxu0 0
        %2196 = vmatpush1.bf16.msra.mxu0 0
        %2197 = vmatprep.subr.bf16.mxu0 0
        %2198 = vmatpush1.bf16.msra.mxu0 0
        %2199 = vmatprep.subr.bf16.mxu0 0
        %2200 = vmatpush1.bf16.msra.mxu0 0
        %2201 = vmatprep.subr.bf16.mxu0 0
        %2202 = vmatpush1.bf16.msra.mxu0 0
        %2203 = vmatprep.subr.bf16.mxu0 0
        %2204 = vmatpush1.bf16.msra.mxu0 0
        %2205 = vmatprep.subr.bf16.mxu0 0
        %2206 = vmatpush1.bf16.msra.mxu0 0
        %2207 = vmatprep.mubr.bf16.mxu0 0
        %2208 = vmatmul.mubr.bf16.gmra.mrb[0].mxu0 %v2173
        %v2209 = vpop.f32.mrb[0].mxu0
        %v2210 = vadd.f32 %v2170, %v2209
        %v2211 = vpop.f32.mrb[0].mxu0
        %v2212 = vpop.f32.mrb[0].mxu0
        %v2213 = vadd.f32 %v2170, %v2212
        %v2214 = vpop.f32.mrb[0].mxu0
        %2215 = vdwg.mxu0
        %v2216 = vmax.f32 %v2210, 0.0
        %v2217 = vmax.f32 %v2213, 0.0
        %v2218 = vld [vmem:[%s817] sm:$0xff]
        %v2219 = vld [vmem:[%s817 + $0x8] sm:$0xff]
        %v2220 = vld [vmem:[%s817 + $0x10] sm:$0xff]
        %v2221 = vld [vmem:[%s817 + $0x18] sm:$0xff]
        %v2222 = vld [vmem:[%s817 + $0x20] sm:$0xff]
        %v2223 = vld [vmem:[%s817 + $0x28] sm:$0xff]
        %v2224 = vld [vmem:[%s817 + $0x30] sm:$0xff]
        %v2225 = vld [vmem:[%s817 + $0x38] sm:$0xff]
        %v2226 = vpack.c.bf16 %v2217, %v2216
        %v2227 = vpack.c.bf16 %v2219, %v2218
        %v2228 = vpack.c.bf16 %v2221, %v2220
        %v2229 = vpack.c.bf16 %v2223, %v2222
        %v2230 = vpack.c.bf16 %v2225, %v2224
        %v2231 = vld [vmem:[%s820] sm:$0x1]
        %v2233 = vlaneseq
        %v2234 = vshrl.u32 %v2233, 7
        %v2235 = vsub.s32 0, %v2234
        %v2236 = vrot.slane %v2231, %v2235
        %vm2238 = vcmask 523264
        %v2240 = vsel %vm2238, %v2226, 0
        %2242 = vmatprep.subr.bf16.mxu0 0
        %2243 = vmatpush1.bf16.msra.mxu0 %v2227
        %2244 = vmatprep.subr.bf16.mxu0 0
        %2245 = vmatpush1.bf16.msra.mxu0 %v2228
        %2246 = vmatprep.subr.bf16.mxu0 0
        %2247 = vmatpush1.bf16.msra.mxu0 %v2229
        %2248 = vmatprep.subr.bf16.mxu0 0
        %2249 = vmatpush1.bf16.msra.mxu0 %v2230
        %2250 = vmatprep.subr.bf16.mxu0 0
        %2251 = vmatpush1.bf16.msra.mxu0 0
        %2252 = vmatprep.subr.bf16.mxu0 0
        %2253 = vmatpush1.bf16.msra.mxu0 0
        %2254 = vmatprep.subr.bf16.mxu0 0
        %2255 = vmatpush1.bf16.msra.mxu0 0
        %2256 = vmatprep.subr.bf16.mxu0 0
        %2257 = vmatpush1.bf16.msra.mxu0 0
        %2258 = vmatprep.subr.bf16.mxu0 0
        %2259 = vmatpush1.bf16.msra.mxu0 0
        %2260 = vmatprep.subr.bf16.mxu0 0
        %2261 = vmatpush1.bf16.msra.mxu0 0
        %2262 = vmatprep.subr.bf16.mxu0 0
        %2263 = vmatpush1.bf16.msra.mxu0 0
        %2264 = vmatprep.subr.bf16.mxu0 0
        %2265 = vmatpush1.bf16.msra.mxu0 0
        %2266 = vmatprep.subr.bf16.mxu0 0
        %2267 = vmatpush1.bf16.msra.mxu0 0
        %2268 = vmatprep.subr.bf16.mxu0 0
        %2269 = vmatpush1.bf16.msra.mxu0 0
        %2270 = vmatprep.subr.bf16.mxu0 0
        %2271 = vmatpush1.bf16.msra.mxu0 0
        %2272 = vmatprep.subr.bf16.mxu0 0
        %2273 = vmatpush1.bf16.msra.mxu0 0
        %2274 = vmatprep.mubr.bf16.mxu0 0
        %2275 = vmatmul.mubr.bf16.gmra.mrb[0].mxu0 %v2240
        %v2276 = vpop.f32.mrb[0].mxu0
        %v2277 = vadd.f32 %v2236, %v2276
        %v2278 = vpop.f32.mrb[0].mxu0
        %v2279 = vpop.f32.mrb[0].mxu0
        %v2280 = vadd.f32 %v2236, %v2279
        %v2281 = vpop.f32.mrb[0].mxu0
        %2282 = vdwg.mxu0
        %v2283 = vadd.f32 %v2156, %v2277
        %v2284 = vadd.f32 %v2157, %v2280
        %v2285 = vsel %vm853, %v2283, 0.0
        %2286 = vadd.xlane.f32.xlu0 %v2285
        %v2287 = vpop.xlane.xlu0 %2286
        %v2288 = vsel %vm853, %v2284, 0.0
        %2289 = vadd.xlane.f32.xlu0 %v2288
        %v2290 = vpop.xlane.xlu0 %2289
        %v2291 = vmul.f32 %v2287, %v2119
        %v2292 = vmul.f32 %v2290, %v2119
        %v2293 = vsub.f32 %v2283, %v2291
        %v2294 = vsub.f32 %v2284, %v2292
        %v2295 = vmul.f32 %v2293, %v2293
        %v2296 = vmul.f32 %v2294, %v2294
        %v2297 = vsel %vm853, %v2295, 0.0
        %2298 = vadd.xlane.f32.xlu0 %v2297
        %v2299 = vpop.xlane.xlu0 %2298
        %v2300 = vsel %vm853, %v2296, 0.0
        %2301 = vadd.xlane.f32.xlu0 %v2300
        %v2302 = vpop.xlane.xlu0 %2301
        %v2303 = vmul.f32 %v2299, %v2119
        %v2304 = vmul.f32 %v2302, %v2119
        %v2305 = vadd.f32 %v2303, 1e-05
        %v2306 = vadd.f32 %v2304, 1e-05
        %v2307 = vrsqrt.pop %v2305
        %v2308 = vrsqrt.pop %v2306
        %v2309 = vmul.f32 %v2293, %v2307
        %v2310 = vmul.f32 %v2294, %v2308
        %v2311 = vld [vmem:[%s823] sm:$0x1]
        %v2313 = vlaneseq
        %v2314 = vshrl.u32 %v2313, 7
        %v2315 = vsub.s32 0, %v2314
        %v2316 = vrot.slane %v2311, %v2315
        %v2318 = vmul.f32 %v2309, %v2316
        %v2319 = vmul.f32 %v2310, %v2316
        %v2320 = vld [vmem:[%s826] sm:$0x1]
        %v2322 = vlaneseq
        %v2323 = vshrl.u32 %v2322, 7
        %v2324 = vsub.s32 0, %v2323
        %v2325 = vrot.slane %v2320, %v2324
        %v2327 = vadd.f32 %v2318, %v2325
        %v2328 = vadd.f32 %v2319, %v2325
        %2329 = vst.msk [vmem:[#allocation8] sm:$0xff] %vm853, %v2327
        %2330 = vst.msk [vmem:[#allocation8 + $0x8] sm:$0xff] %vm853, %v2328
        // Predicated region
        $region105: #{tpu_custom_call.1} parent=87 // pred_check
          %p2331 = pneg %p483
        $region106: #{tpu_custom_call.1} parent=87 // pred_check_branch
          %2333 = sbr.rel (%p2331) target = $region108
        $region107: #{tpu_custom_call.1} parent=87 // pred_region
          %s2335 = ssub.s32 256, 256
          %2336 = vsyncadd [#allocation4], %s2335
          %s2337 = sshll.u32 [#allocation8], 4
          %s2338 = int_to_ptr.vmem [resolvable:$true] %s2337
          %2343 = dma.vmem_to_hbm [thread:$0]  %s2338, 256, %s17, [#allocation4], 128, 128, 8
        $region108: #{tpu_custom_call.1} parent=87 // pred_fallthru
          _
        // Predicated region
        $region109: #{tpu_custom_call.1} parent=87 // pred_check
          %p2344 = pneg %p483
        $region110: #{tpu_custom_call.1} parent=87 // pred_check_branch
          %2346 = sbr.rel (%p2344) target = $region112
        $region111: #{tpu_custom_call.1} parent=87 // pred_region
          %2347 = dma.done [#allocation4], 256
        $region112: #{tpu_custom_call.1} parent=87 // pred_fallthru
          _
      $region88: #{tpu_custom_call.1} parent=5 // pred_fallthru
        _
      %p2348 = scmp.le.s32.totalorder 2, %s28
      // Predicated region
      $region113: #{tpu_custom_call.1} parent=5 // pred_check
        %p2349 = pneg %p2348
      $region114: #{tpu_custom_call.1} parent=5 // pred_check_branch
        %2351 = sbr.rel (%p2349) target = $region116
      $region115: #{tpu_custom_call.1} parent=5 // pred_region
        %s2352 = ssub.s32 %s28, 2
      $region116: #{tpu_custom_call.1} parent=5 // pred_fallthru
        _
    $region6: #{tpu_custom_call.1} parent=1 // loop_footer
      %s32 = sadd.s32 1, %s28
    $region7: #{tpu_custom_call.1} parent=1 // loop_footer_branch
      %27 = sbr.rel target = $region3
    $region8: #{tpu_custom_call.1} parent=1 // loop_exit
      _
    %2353 = vsyncpa [#allocation3], 1
    %s2354 = scalar_lea.sflag [#allocation3], 1
    %2355 = vsyncpa %s2354, 1
    %2356 = vsyncpa [#allocation6], 1
    %s2357 = scalar_lea.sflag [#allocation6], 1
    %2358 = vsyncpa %s2357, 1
    %2359 = vsyncpa [#allocation4], 1
    %s2360 = scalar_lea.sflag [#allocation4], 1
    %2361 = vsyncpa %s2360, 1

</llo_original>
